<compile_context>
chip_gen: v5e
topology: v5e:2x2
jax: 0.10.0
libtpu: 0.0.40
codegen_flags: <defaults>
</compile_context>

<pallas_src>
import jax
import jax.numpy as jnp
from jax.experimental import pallas as pl
from jax.experimental.pallas import tpu as pltpu
import numpy as np

NLANE = 128  # lane-dense epilogue width (softmax over 2 real classes + padding)


def _make_kernel(T, B, H):
    """Build the kernel with static T (seq len), B (padded batch), H (hidden)."""

    def kernel(xf_ref,       # (T*B, D)    bf16, time-major flattened: row = t*B + b
               w_ih0_ref,    # (D, 4H)     bf16
               b0_ref,       # (1, 4H)     f32  = b_ih_l0 + b_hh_l0
               w_fused_ref,  # (2H, 8H)    bf16: [:, :4H]=[w_ih1;w_hh1], [:, 4H:]=[w_hh0;0]
               b1_ref,       # (1, 4H)     f32  = b_ih_l1 + b_hh_l1
               w_fc_ref,     # (H, NLANE)  bf16 (cols 2: are zero)
               b_fc_ref,     # (1, NLANE)  f32  (cols 2: are -1e30)
               out_ref):     # (B, NLANE)  f32 softmax probs (cols 2: are zero)
        # Weight loads hoisted out of the unrolled loop (vreg-resident).
        w_fused = w_fused_ref[...]
        b1 = b1_ref[...]

        # Time-invariant layer-0 input projection, off the serial chain:
        # one (T*B, D) @ (D, 4H) bf16 matmul + f32 bias.
        gx0 = (jnp.dot(xf_ref[...], w_ih0_ref[...],
                       preferred_element_type=jnp.float32) + b0_ref[...])

        def gate_act(gates, c_prev):
            # Full-lane sigmoid covers i/f/o; tanh only on the g slice (EUP
            # traffic ~halved).  PyTorch gate order: i, f, g, o.  All f32.
            sig = jax.nn.sigmoid(gates)
            i = sig[:, 0 * H:1 * H]
            f = sig[:, 1 * H:2 * H]
            o = sig[:, 3 * H:4 * H]
            g = jnp.tanh(gates[:, 2 * H:3 * H])
            c_new = f * c_prev + i * g
            h_new = o * jnp.tanh(c_new)
            return h_new, c_new

        zh = jnp.zeros((B, H), jnp.float32)         # PyTorch default h0 = c0 = 0
        h1, c0, c1 = zh, zh, zh
        rec0 = jnp.zeros((B, 4 * H), jnp.float32)   # h0(t-1) @ w_hh0; zero at t=0

        # Fully unrolled recurrence (T static & small); state stays in vregs.
        for t in range(T):
            # layer 0 at step t: recurrent term came from the previous fused dot
            gates0 = gx0[t * B:(t + 1) * B, :] + rec0
            h0, c0 = gate_act(gates0, c0)

            # Single block-diagonal MXU push per step (bf16 operands, f32 acc):
            #   lanes   0:4H -> gates1(t)          (layer-1 ih+hh fused)
            #   lanes 4H:8H  -> h0(t) @ w_hh0      (recurrent part of gates0(t+1))
            hcat = jnp.concatenate([h0, h1], axis=-1).astype(jnp.bfloat16)  # (B,2H)
            big = jnp.dot(hcat, w_fused, preferred_element_type=jnp.float32)
            gates1 = big[:, :4 * H] + b1
            rec0 = big[:, 4 * H:]

            # layer 1 at step t (inter-layer dropout is identity in eval mode)
            h1, c1 = gate_act(gates1, c1)

        # lstm_out[:, -1] == h1; dropout (eval) = identity.
        # Lane-dense FC + softmax epilogue: padded lanes get logit -1e30 -> exp 0.
        logits = (jnp.dot(h1.astype(jnp.bfloat16), w_fc_ref[...],
                          preferred_element_type=jnp.float32) + b_fc_ref[...])
        m = jnp.max(logits, axis=1, keepdims=True)
        e = jnp.exp(logits - m)
        out_ref[...] = e / jnp.sum(e, axis=1, keepdims=True)

    return kernel


@jax.jit
def lstm_net_forward(x, params):
    """x: (B, T, D) float32, batch_first (PyTorch convention)."""
    B, T, D = x.shape
    H = params["w_hh0"].shape[0]

    # Pad batch to the f32 sublane minimum (multiple of 8).
    B_pad = max(8, ((B + 7) // 8) * 8)
    x_p = jnp.pad(x, ((0, B_pad - B), (0, 0), (0, 0)))
    # Time-major + flatten: row index = t * B_pad + b.  bf16 MXU operand.
    x_flat = jnp.transpose(x_p, (1, 0, 2)).reshape(T * B_pad, D).astype(jnp.bfloat16)

    # Block-diagonal fused recurrent weight (2H, 8H):
    #   cols 0:4H  (gates1):              [w_ih1; w_hh1]
    #   cols 4H:8H (recurrent gates0):    [w_hh0; 0]
    w_gate1 = jnp.concatenate([params["w_ih1"], params["w_hh1"]], axis=0)    # (2H,4H)
    w_rec0 = jnp.concatenate([params["w_hh0"],
                              jnp.zeros((H, 4 * H), jnp.float32)], axis=0)   # (2H,4H)
    w_fused = jnp.concatenate([w_gate1, w_rec0], axis=1).astype(jnp.bfloat16)  # (2H,8H)

    w_ih0 = params["w_ih0"].astype(jnp.bfloat16)

    # Lane-dense epilogue: zero-pad fc weight to NLANE output lanes; pad the
    # bias with a large negative so padded lanes contribute exp(.)=0 to softmax.
    w_fc_pad = (jnp.zeros((H, NLANE), jnp.float32)
                .at[:, :2].set(params["w_fc"]).astype(jnp.bfloat16))
    b_fc_pad = jnp.full((1, NLANE), -1e30, jnp.float32).at[:, :2].set(params["b_fc"])

    cost = pl.CostEstimate(
        flops=(2 * T * B_pad * D * 4 * H            # layer-0 input projection
               + 2 * T * B_pad * (2 * H) * (8 * H)  # fused per-step recurrent dots
               + 2 * B_pad * H * NLANE),            # fc epilogue
        transcendentals=T * 2 * B_pad * 6 * H + B_pad * NLANE,
        bytes_accessed=(x_flat.size + w_ih0.size + w_fused.size + w_fc_pad.size) * 2
                       + (params["b0"].size + params["b1"].size + b_fc_pad.size) * 4
                       + B_pad * NLANE * 4,
    )

    vmem = pl.BlockSpec(memory_space=pltpu.MemorySpace.VMEM)
    out = pl.pallas_call(
        _make_kernel(T, B_pad, H),
        out_shape=jax.ShapeDtypeStruct((B_pad, NLANE), jnp.float32),
        in_specs=[vmem] * 7,
        out_specs=vmem,
        cost_estimate=cost,
    )(x_flat, w_ih0, params["b0"], w_fused, params["b1"], w_fc_pad, b_fc_pad)

    return out[:B, :2]


def init_params(key, input_dim, hidden_dim):
    """Deterministic init mirroring PyTorch shapes (uniform +-1/sqrt(H))."""
    H = hidden_dim
    k = 1.0 / np.sqrt(H)
    keys = jax.random.split(key, 10)
    u = lambda kk, shape: jax.random.uniform(kk, shape, jnp.float32, -k, k)

    # PyTorch stores weight_ih_l0: (4H, D) etc.; we pre-transpose for h @ W.
    w_ih0 = u(keys[0], (4 * H, input_dim)).T       # (D, 4H)
    w_hh0 = u(keys[1], (4 * H, H)).T               # (H, 4H)
    b0 = (u(keys[2], (4 * H,)) + u(keys[3], (4 * H,))).reshape(1, 4 * H)
    w_ih1 = u(keys[4], (4 * H, H)).T               # (H, 4H)
    w_hh1 = u(keys[5], (4 * H, H)).T               # (H, 4H)
    b1 = (u(keys[6], (4 * H,)) + u(keys[7], (4 * H,))).reshape(1, 4 * H)
    w_fc = u(keys[8], (2, H)).T                    # (H, 2)
    b_fc = u(keys[9], (2,)).reshape(1, 2)
    return dict(w_ih0=w_ih0, w_hh0=w_hh0, b0=b0,
                w_ih1=w_ih1, w_hh1=w_hh1, b1=b1,
                w_fc=w_fc, b_fc=b_fc)


def ref_forward(x, p):
    """Pure-JAX f32 reference of the same forward pass (eval mode)."""
    B, T, D = x.shape
    H = p["w_hh0"].shape[0]

    def cell(x_t, h, c, w_ih, w_hh, b):
        gates = x_t @ w_ih + h @ w_hh + b
        i = jax.nn.sigmoid(gates[:, 0 * H:1 * H])
        f = jax.nn.sigmoid(gates[:, 1 * H:2 * H])
        g = jnp.tanh(gates[:, 2 * H:3 * H])
        o = jax.nn.sigmoid(gates[:, 3 * H:4 * H])
        c = f * c + i * g
        h = o * jnp.tanh(c)
        return h, c

    h0 = c0 = h1 = c1 = jnp.zeros((B, H), jnp.float32)
    for t in range(T):
        h0, c0 = cell(x[:, t, :], h0, c0, p["w_ih0"], p["w_hh0"], p["b0"])
        h1, c1 = cell(h0, h1, c1, p["w_ih1"], p["w_hh1"], p["b1"])
    logits = h1 @ p["w_fc"] + p["b_fc"]
    return jax.nn.softmax(logits, axis=1)


if __name__ == "__main__":
    B, T, D, H = 2, 8, 16, 32   # batch, seq, input_dim, hidden_dim

    key = jax.random.PRNGKey(0)
    kx, kp = jax.random.split(key)
    x = jax.random.normal(kx, (B, T, D), dtype=jnp.float32)
    params = init_params(kp, D, H)

    out = lstm_net_forward(x, params)
    out = jax.block_until_ready(out)

    # Loose tolerance vs. the f32 reference: MXU operands are bf16 in the kernel.
    expected = ref_forward(x, params)
    np.testing.assert_allclose(np.asarray(out), np.asarray(expected),
                               rtol=2e-2, atol=2e-2)
    assert out.shape == (B, 2)
    # rows of a softmax sum to 1 (padded lanes contribute exactly 0)
    np.testing.assert_allclose(np.asarray(out).sum(axis=1), np.ones(B),
                               rtol=1e-5, atol=1e-5)

    print("KERNEL_OK")
</pallas_src>

<mosaic_0001>
module attributes {stable_mosaic.version = 11 : i64} {
  func.func @kernel(%arg0: memref<64x16xbf16, #tpu.memory_space<vmem>>, %arg1: memref<16x128xbf16, #tpu.memory_space<vmem>>, %arg2: memref<1x128xf32, #tpu.memory_space<vmem>>, %arg3: memref<64x256xbf16, #tpu.memory_space<vmem>>, %arg4: memref<1x128xf32, #tpu.memory_space<vmem>>, %arg5: memref<32x128xbf16, #tpu.memory_space<vmem>>, %arg6: memref<1x128xf32, #tpu.memory_space<vmem>>, %arg7: memref<8x128xf32, #tpu.memory_space<vmem>>) attributes {dimension_semantics = [], scalar_prefetch = 0 : i64, scratch_operands = 0 : i64, tpu.core_type = #tpu.core_type<tc>} {
    %c0 = arith.constant 0 : index
    %c0_0 = arith.constant 0 : index
    %0 = vector.load %arg3[%c0, %c0_0] : memref<64x256xbf16, #tpu.memory_space<vmem>>, vector<64x256xbf16>
    %c0_1 = arith.constant 0 : index
    %c0_2 = arith.constant 0 : index
    %1 = vector.load %arg4[%c0_1, %c0_2] : memref<1x128xf32, #tpu.memory_space<vmem>>, vector<1x128xf32>
    %c0_3 = arith.constant 0 : index
    %c0_4 = arith.constant 0 : index
    %2 = vector.load %arg0[%c0_3, %c0_4] : memref<64x16xbf16, #tpu.memory_space<vmem>>, vector<64x16xbf16>
    %c0_5 = arith.constant 0 : index
    %c0_6 = arith.constant 0 : index
    %3 = vector.load %arg1[%c0_5, %c0_6] : memref<16x128xbf16, #tpu.memory_space<vmem>>, vector<16x128xbf16>
    %cst = arith.constant dense<0.000000e+00> : vector<64x128xf32>
    %4 = tpu.matmul %2, %3, %cst {dimension_numbers = #tpu.dot_dimension_numbers<[1], [0], [0], [1], [0, 0, 1, 1], [], []>} : vector<64x16xbf16>, vector<16x128xbf16>, vector<64x128xf32> -> vector<64x128xf32>
    %c0_7 = arith.constant 0 : index
    %c0_8 = arith.constant 0 : index
    %5 = vector.load %arg2[%c0_7, %c0_8] : memref<1x128xf32, #tpu.memory_space<vmem>>, vector<1x128xf32>
    %6 = vector.broadcast %5 : vector<1x128xf32> to vector<64x128xf32>
    %7 = arith.addf %4, %6 : vector<64x128xf32>
    %cst_9 = arith.constant 0.000000e+00 : f32
    %8 = vector.broadcast %cst_9 : f32 to vector<8x32xf32>
    %cst_10 = arith.constant 0.000000e+00 : f32
    %9 = vector.broadcast %cst_10 : f32 to vector<8x128xf32>
    %10 = vector.extract_strided_slice %7 {offsets = [0, 0], sizes = [8, 128], strides = [1, 1]} : vector<64x128xf32> to vector<8x128xf32>
    %11 = arith.addf %10, %9 : vector<8x128xf32>
    %12 = arith.negf %11 : vector<8x128xf32>
    %13 = math.exp %12 : vector<8x128xf32>
    %cst_11 = arith.constant 1.000000e+00 : f32
    %14 = vector.broadcast %cst_11 : f32 to vector<8x128xf32>
    %15 = arith.addf %14, %13 : vector<8x128xf32>
    %16 = arith.divf %14, %15 : vector<8x128xf32>
    %17 = vector.extract_strided_slice %16 {offsets = [0, 0], sizes = [8, 32], strides = [1, 1]} : vector<8x128xf32> to vector<8x32xf32>
    %18 = vector.extract_strided_slice %16 {offsets = [0, 32], sizes = [8, 32], strides = [1, 1]} : vector<8x128xf32> to vector<8x32xf32>
    %19 = vector.extract_strided_slice %16 {offsets = [0, 96], sizes = [8, 32], strides = [1, 1]} : vector<8x128xf32> to vector<8x32xf32>
    %20 = vector.extract_strided_slice %11 {offsets = [0, 64], sizes = [8, 32], strides = [1, 1]} : vector<8x128xf32> to vector<8x32xf32>
    %21 = math.tanh %20 : vector<8x32xf32>
    %22 = arith.mulf %18, %8 : vector<8x32xf32>
    %23 = arith.mulf %17, %21 : vector<8x32xf32>
    %24 = arith.addf %22, %23 : vector<8x32xf32>
    %25 = math.tanh %24 : vector<8x32xf32>
    %26 = arith.mulf %19, %25 : vector<8x32xf32>
    %27 = tpu.concatenate %26, %8 in 1 : vector<8x32xf32>, vector<8x32xf32> -> vector<8x64xf32>
    %28 = arith.truncf %27 : vector<8x64xf32> to vector<8x64xbf16>
    %cst_12 = arith.constant dense<0.000000e+00> : vector<8x256xf32>
    %29 = tpu.matmul %28, %0, %cst_12 {dimension_numbers = #tpu.dot_dimension_numbers<[1], [0], [0], [1], [0, 0, 1, 1], [], []>} : vector<8x64xbf16>, vector<64x256xbf16>, vector<8x256xf32> -> vector<8x256xf32>
    %30 = vector.extract_strided_slice %29 {offsets = [0, 0], sizes = [8, 128], strides = [1, 1]} : vector<8x256xf32> to vector<8x128xf32>
    %31 = vector.broadcast %1 : vector<1x128xf32> to vector<8x128xf32>
    %32 = arith.addf %30, %31 : vector<8x128xf32>
    %33 = vector.extract_strided_slice %29 {offsets = [0, 128], sizes = [8, 128], strides = [1, 1]} : vector<8x256xf32> to vector<8x128xf32>
    %34 = arith.negf %32 : vector<8x128xf32>
    %35 = math.exp %34 : vector<8x128xf32>
    %cst_13 = arith.constant 1.000000e+00 : f32
    %36 = vector.broadcast %cst_13 : f32 to vector<8x128xf32>
    %37 = arith.addf %36, %35 : vector<8x128xf32>
    %38 = arith.divf %36, %37 : vector<8x128xf32>
    %39 = vector.extract_strided_slice %38 {offsets = [0, 0], sizes = [8, 32], strides = [1, 1]} : vector<8x128xf32> to vector<8x32xf32>
    %40 = vector.extract_strided_slice %38 {offsets = [0, 32], sizes = [8, 32], strides = [1, 1]} : vector<8x128xf32> to vector<8x32xf32>
    %41 = vector.extract_strided_slice %38 {offsets = [0, 96], sizes = [8, 32], strides = [1, 1]} : vector<8x128xf32> to vector<8x32xf32>
    %42 = vector.extract_strided_slice %32 {offsets = [0, 64], sizes = [8, 32], strides = [1, 1]} : vector<8x128xf32> to vector<8x32xf32>
    %43 = math.tanh %42 : vector<8x32xf32>
    %44 = arith.mulf %40, %8 : vector<8x32xf32>
    %45 = arith.mulf %39, %43 : vector<8x32xf32>
    %46 = arith.addf %44, %45 : vector<8x32xf32>
    %47 = math.tanh %46 : vector<8x32xf32>
    %48 = arith.mulf %41, %47 : vector<8x32xf32>
    %49 = vector.extract_strided_slice %7 {offsets = [8, 0], sizes = [8, 128], strides = [1, 1]} : vector<64x128xf32> to vector<8x128xf32>
    %50 = arith.addf %49, %33 : vector<8x128xf32>
    %51 = arith.negf %50 : vector<8x128xf32>
    %52 = math.exp %51 : vector<8x128xf32>
    %cst_14 = arith.constant 1.000000e+00 : f32
    %53 = vector.broadcast %cst_14 : f32 to vector<8x128xf32>
    %54 = arith.addf %53, %52 : vector<8x128xf32>
    %55 = arith.divf %53, %54 : vector<8x128xf32>
    %56 = vector.extract_strided_slice %55 {offsets = [0, 0], sizes = [8, 32], strides = [1, 1]} : vector<8x128xf32> to vector<8x32xf32>
    %57 = vector.extract_strided_slice %55 {offsets = [0, 32], sizes = [8, 32], strides = [1, 1]} : vector<8x128xf32> to vector<8x32xf32>
    %58 = vector.extract_strided_slice %55 {offsets = [0, 96], sizes = [8, 32], strides = [1, 1]} : vector<8x128xf32> to vector<8x32xf32>
    %59 = vector.extract_strided_slice %50 {offsets = [0, 64], sizes = [8, 32], strides = [1, 1]} : vector<8x128xf32> to vector<8x32xf32>
    %60 = math.tanh %59 : vector<8x32xf32>
    %61 = arith.mulf %57, %24 : vector<8x32xf32>
    %62 = arith.mulf %56, %60 : vector<8x32xf32>
    %63 = arith.addf %61, %62 : vector<8x32xf32>
    %64 = math.tanh %63 : vector<8x32xf32>
    %65 = arith.mulf %58, %64 : vector<8x32xf32>
    %66 = tpu.concatenate %65, %48 in 1 : vector<8x32xf32>, vector<8x32xf32> -> vector<8x64xf32>
    %67 = arith.truncf %66 : vector<8x64xf32> to vector<8x64xbf16>
    %cst_15 = arith.constant dense<0.000000e+00> : vector<8x256xf32>
    %68 = tpu.matmul %67, %0, %cst_15 {dimension_numbers = #tpu.dot_dimension_numbers<[1], [0], [0], [1], [0, 0, 1, 1], [], []>} : vector<8x64xbf16>, vector<64x256xbf16>, vector<8x256xf32> -> vector<8x256xf32>
    %69 = vector.extract_strided_slice %68 {offsets = [0, 0], sizes = [8, 128], strides = [1, 1]} : vector<8x256xf32> to vector<8x128xf32>
    %70 = vector.broadcast %1 : vector<1x128xf32> to vector<8x128xf32>
    %71 = arith.addf %69, %70 : vector<8x128xf32>
    %72 = vector.extract_strided_slice %68 {offsets = [0, 128], sizes = [8, 128], strides = [1, 1]} : vector<8x256xf32> to vector<8x128xf32>
    %73 = arith.negf %71 : vector<8x128xf32>
    %74 = math.exp %73 : vector<8x128xf32>
    %cst_16 = arith.constant 1.000000e+00 : f32
    %75 = vector.broadcast %cst_16 : f32 to vector<8x128xf32>
    %76 = arith.addf %75, %74 : vector<8x128xf32>
    %77 = arith.divf %75, %76 : vector<8x128xf32>
    %78 = vector.extract_strided_slice %77 {offsets = [0, 0], sizes = [8, 32], strides = [1, 1]} : vector<8x128xf32> to vector<8x32xf32>
    %79 = vector.extract_strided_slice %77 {offsets = [0, 32], sizes = [8, 32], strides = [1, 1]} : vector<8x128xf32> to vector<8x32xf32>
    %80 = vector.extract_strided_slice %77 {offsets = [0, 96], sizes = [8, 32], strides = [1, 1]} : vector<8x128xf32> to vector<8x32xf32>
    %81 = vector.extract_strided_slice %71 {offsets = [0, 64], sizes = [8, 32], strides = [1, 1]} : vector<8x128xf32> to vector<8x32xf32>
    %82 = math.tanh %81 : vector<8x32xf32>
    %83 = arith.mulf %79, %46 : vector<8x32xf32>
    %84 = arith.mulf %78, %82 : vector<8x32xf32>
    %85 = arith.addf %83, %84 : vector<8x32xf32>
    %86 = math.tanh %85 : vector<8x32xf32>
    %87 = arith.mulf %80, %86 : vector<8x32xf32>
    %88 = vector.extract_strided_slice %7 {offsets = [16, 0], sizes = [8, 128], strides = [1, 1]} : vector<64x128xf32> to vector<8x128xf32>
    %89 = arith.addf %88, %72 : vector<8x128xf32>
    %90 = arith.negf %89 : vector<8x128xf32>
    %91 = math.exp %90 : vector<8x128xf32>
    %cst_17 = arith.constant 1.000000e+00 : f32
    %92 = vector.broadcast %cst_17 : f32 to vector<8x128xf32>
    %93 = arith.addf %92, %91 : vector<8x128xf32>
    %94 = arith.divf %92, %93 : vector<8x128xf32>
    %95 = vector.extract_strided_slice %94 {offsets = [0, 0], sizes = [8, 32], strides = [1, 1]} : vector<8x128xf32> to vector<8x32xf32>
    %96 = vector.extract_strided_slice %94 {offsets = [0, 32], sizes = [8, 32], strides = [1, 1]} : vector<8x128xf32> to vector<8x32xf32>
    %97 = vector.extract_strided_slice %94 {offsets = [0, 96], sizes = [8, 32], strides = [1, 1]} : vector<8x128xf32> to vector<8x32xf32>
    %98 = vector.extract_strided_slice %89 {offsets = [0, 64], sizes = [8, 32], strides = [1, 1]} : vector<8x128xf32> to vector<8x32xf32>
    %99 = math.tanh %98 : vector<8x32xf32>
    %100 = arith.mulf %96, %63 : vector<8x32xf32>
    %101 = arith.mulf %95, %99 : vector<8x32xf32>
    %102 = arith.addf %100, %101 : vector<8x32xf32>
    %103 = math.tanh %102 : vector<8x32xf32>
    %104 = arith.mulf %97, %103 : vector<8x32xf32>
    %105 = tpu.concatenate %104, %87 in 1 : vector<8x32xf32>, vector<8x32xf32> -> vector<8x64xf32>
    %106 = arith.truncf %105 : vector<8x64xf32> to vector<8x64xbf16>
    %cst_18 = arith.constant dense<0.000000e+00> : vector<8x256xf32>
    %107 = tpu.matmul %106, %0, %cst_18 {dimension_numbers = #tpu.dot_dimension_numbers<[1], [0], [0], [1], [0, 0, 1, 1], [], []>} : vector<8x64xbf16>, vector<64x256xbf16>, vector<8x256xf32> -> vector<8x256xf32>
    %108 = vector.extract_strided_slice %107 {offsets = [0, 0], sizes = [8, 128], strides = [1, 1]} : vector<8x256xf32> to vector<8x128xf32>
    %109 = vector.broadcast %1 : vector<1x128xf32> to vector<8x128xf32>
    %110 = arith.addf %108, %109 : vector<8x128xf32>
    %111 = vector.extract_strided_slice %107 {offsets = [0, 128], sizes = [8, 128], strides = [1, 1]} : vector<8x256xf32> to vector<8x128xf32>
    %112 = arith.negf %110 : vector<8x128xf32>
    %113 = math.exp %112 : vector<8x128xf32>
    %cst_19 = arith.constant 1.000000e+00 : f32
    %114 = vector.broadcast %cst_19 : f32 to vector<8x128xf32>
    %115 = arith.addf %114, %113 : vector<8x128xf32>
    %116 = arith.divf %114, %115 : vector<8x128xf32>
    %117 = vector.extract_strided_slice %116 {offsets = [0, 0], sizes = [8, 32], strides = [1, 1]} : vector<8x128xf32> to vector<8x32xf32>
    %118 = vector.extract_strided_slice %116 {offsets = [0, 32], sizes = [8, 32], strides = [1, 1]} : vector<8x128xf32> to vector<8x32xf32>
    %119 = vector.extract_strided_slice %116 {offsets = [0, 96], sizes = [8, 32], strides = [1, 1]} : vector<8x128xf32> to vector<8x32xf32>
    %120 = vector.extract_strided_slice %110 {offsets = [0, 64], sizes = [8, 32], strides = [1, 1]} : vector<8x128xf32> to vector<8x32xf32>
    %121 = math.tanh %120 : vector<8x32xf32>
    %122 = arith.mulf %118, %85 : vector<8x32xf32>
    %123 = arith.mulf %117, %121 : vector<8x32xf32>
    %124 = arith.addf %122, %123 : vector<8x32xf32>
    %125 = math.tanh %124 : vector<8x32xf32>
    %126 = arith.mulf %119, %125 : vector<8x32xf32>
    %127 = vector.extract_strided_slice %7 {offsets = [24, 0], sizes = [8, 128], strides = [1, 1]} : vector<64x128xf32> to vector<8x128xf32>
    %128 = arith.addf %127, %111 : vector<8x128xf32>
    %129 = arith.negf %128 : vector<8x128xf32>
    %130 = math.exp %129 : vector<8x128xf32>
    %cst_20 = arith.constant 1.000000e+00 : f32
    %131 = vector.broadcast %cst_20 : f32 to vector<8x128xf32>
    %132 = arith.addf %131, %130 : vector<8x128xf32>
    %133 = arith.divf %131, %132 : vector<8x128xf32>
    %134 = vector.extract_strided_slice %133 {offsets = [0, 0], sizes = [8, 32], strides = [1, 1]} : vector<8x128xf32> to vector<8x32xf32>
    %135 = vector.extract_strided_slice %133 {offsets = [0, 32], sizes = [8, 32], strides = [1, 1]} : vector<8x128xf32> to vector<8x32xf32>
    %136 = vector.extract_strided_slice %133 {offsets = [0, 96], sizes = [8, 32], strides = [1, 1]} : vector<8x128xf32> to vector<8x32xf32>
    %137 = vector.extract_strided_slice %128 {offsets = [0, 64], sizes = [8, 32], strides = [1, 1]} : vector<8x128xf32> to vector<8x32xf32>
    %138 = math.tanh %137 : vector<8x32xf32>
    %139 = arith.mulf %135, %102 : vector<8x32xf32>
    %140 = arith.mulf %134, %138 : vector<8x32xf32>
    %141 = arith.addf %139, %140 : vector<8x32xf32>
    %142 = math.tanh %141 : vector<8x32xf32>
    %143 = arith.mulf %136, %142 : vector<8x32xf32>
    %144 = tpu.concatenate %143, %126 in 1 : vector<8x32xf32>, vector<8x32xf32> -> vector<8x64xf32>
    %145 = arith.truncf %144 : vector<8x64xf32> to vector<8x64xbf16>
    %cst_21 = arith.constant dense<0.000000e+00> : vector<8x256xf32>
    %146 = tpu.matmul %145, %0, %cst_21 {dimension_numbers = #tpu.dot_dimension_numbers<[1], [0], [0], [1], [0, 0, 1, 1], [], []>} : vector<8x64xbf16>, vector<64x256xbf16>, vector<8x256xf32> -> vector<8x256xf32>
    %147 = vector.extract_strided_slice %146 {offsets = [0, 0], sizes = [8, 128], strides = [1, 1]} : vector<8x256xf32> to vector<8x128xf32>
    %148 = vector.broadcast %1 : vector<1x128xf32> to vector<8x128xf32>
    %149 = arith.addf %147, %148 : vector<8x128xf32>
    %150 = vector.extract_strided_slice %146 {offsets = [0, 128], sizes = [8, 128], strides = [1, 1]} : vector<8x256xf32> to vector<8x128xf32>
    %151 = arith.negf %149 : vector<8x128xf32>
    %152 = math.exp %151 : vector<8x128xf32>
    %cst_22 = arith.constant 1.000000e+00 : f32
    %153 = vector.broadcast %cst_22 : f32 to vector<8x128xf32>
    %154 = arith.addf %153, %152 : vector<8x128xf32>
    %155 = arith.divf %153, %154 : vector<8x128xf32>
    %156 = vector.extract_strided_slice %155 {offsets = [0, 0], sizes = [8, 32], strides = [1, 1]} : vector<8x128xf32> to vector<8x32xf32>
    %157 = vector.extract_strided_slice %155 {offsets = [0, 32], sizes = [8, 32], strides = [1, 1]} : vector<8x128xf32> to vector<8x32xf32>
    %158 = vector.extract_strided_slice %155 {offsets = [0, 96], sizes = [8, 32], strides = [1, 1]} : vector<8x128xf32> to vector<8x32xf32>
    %159 = vector.extract_strided_slice %149 {offsets = [0, 64], sizes = [8, 32], strides = [1, 1]} : vector<8x128xf32> to vector<8x32xf32>
    %160 = math.tanh %159 : vector<8x32xf32>
    %161 = arith.mulf %157, %124 : vector<8x32xf32>
    %162 = arith.mulf %156, %160 : vector<8x32xf32>
    %163 = arith.addf %161, %162 : vector<8x32xf32>
    %164 = math.tanh %163 : vector<8x32xf32>
    %165 = arith.mulf %158, %164 : vector<8x32xf32>
    %166 = vector.extract_strided_slice %7 {offsets = [32, 0], sizes = [8, 128], strides = [1, 1]} : vector<64x128xf32> to vector<8x128xf32>
    %167 = arith.addf %166, %150 : vector<8x128xf32>
    %168 = arith.negf %167 : vector<8x128xf32>
    %169 = math.exp %168 : vector<8x128xf32>
    %cst_23 = arith.constant 1.000000e+00 : f32
    %170 = vector.broadcast %cst_23 : f32 to vector<8x128xf32>
    %171 = arith.addf %170, %169 : vector<8x128xf32>
    %172 = arith.divf %170, %171 : vector<8x128xf32>
    %173 = vector.extract_strided_slice %172 {offsets = [0, 0], sizes = [8, 32], strides = [1, 1]} : vector<8x128xf32> to vector<8x32xf32>
    %174 = vector.extract_strided_slice %172 {offsets = [0, 32], sizes = [8, 32], strides = [1, 1]} : vector<8x128xf32> to vector<8x32xf32>
    %175 = vector.extract_strided_slice %172 {offsets = [0, 96], sizes = [8, 32], strides = [1, 1]} : vector<8x128xf32> to vector<8x32xf32>
    %176 = vector.extract_strided_slice %167 {offsets = [0, 64], sizes = [8, 32], strides = [1, 1]} : vector<8x128xf32> to vector<8x32xf32>
    %177 = math.tanh %176 : vector<8x32xf32>
    %178 = arith.mulf %174, %141 : vector<8x32xf32>
    %179 = arith.mulf %173, %177 : vector<8x32xf32>
    %180 = arith.addf %178, %179 : vector<8x32xf32>
    %181 = math.tanh %180 : vector<8x32xf32>
    %182 = arith.mulf %175, %181 : vector<8x32xf32>
    %183 = tpu.concatenate %182, %165 in 1 : vector<8x32xf32>, vector<8x32xf32> -> vector<8x64xf32>
    %184 = arith.truncf %183 : vector<8x64xf32> to vector<8x64xbf16>
    %cst_24 = arith.constant dense<0.000000e+00> : vector<8x256xf32>
    %185 = tpu.matmul %184, %0, %cst_24 {dimension_numbers = #tpu.dot_dimension_numbers<[1], [0], [0], [1], [0, 0, 1, 1], [], []>} : vector<8x64xbf16>, vector<64x256xbf16>, vector<8x256xf32> -> vector<8x256xf32>
    %186 = vector.extract_strided_slice %185 {offsets = [0, 0], sizes = [8, 128], strides = [1, 1]} : vector<8x256xf32> to vector<8x128xf32>
    %187 = vector.broadcast %1 : vector<1x128xf32> to vector<8x128xf32>
    %188 = arith.addf %186, %187 : vector<8x128xf32>
    %189 = vector.extract_strided_slice %185 {offsets = [0, 128], sizes = [8, 128], strides = [1, 1]} : vector<8x256xf32> to vector<8x128xf32>
    %190 = arith.negf %188 : vector<8x128xf32>
    %191 = math.exp %190 : vector<8x128xf32>
    %cst_25 = arith.constant 1.000000e+00 : f32
    %192 = vector.broadcast %cst_25 : f32 to vector<8x128xf32>
    %193 = arith.addf %192, %191 : vector<8x128xf32>
    %194 = arith.divf %192, %193 : vector<8x128xf32>
    %195 = vector.extract_strided_slice %194 {offsets = [0, 0], sizes = [8, 32], strides = [1, 1]} : vector<8x128xf32> to vector<8x32xf32>
    %196 = vector.extract_strided_slice %194 {offsets = [0, 32], sizes = [8, 32], strides = [1, 1]} : vector<8x128xf32> to vector<8x32xf32>
    %197 = vector.extract_strided_slice %194 {offsets = [0, 96], sizes = [8, 32], strides = [1, 1]} : vector<8x128xf32> to vector<8x32xf32>
    %198 = vector.extract_strided_slice %188 {offsets = [0, 64], sizes = [8, 32], strides = [1, 1]} : vector<8x128xf32> to vector<8x32xf32>
    %199 = math.tanh %198 : vector<8x32xf32>
    %200 = arith.mulf %196, %163 : vector<8x32xf32>
    %201 = arith.mulf %195, %199 : vector<8x32xf32>
    %202 = arith.addf %200, %201 : vector<8x32xf32>
    %203 = math.tanh %202 : vector<8x32xf32>
    %204 = arith.mulf %197, %203 : vector<8x32xf32>
    %205 = vector.extract_strided_slice %7 {offsets = [40, 0], sizes = [8, 128], strides = [1, 1]} : vector<64x128xf32> to vector<8x128xf32>
    %206 = arith.addf %205, %189 : vector<8x128xf32>
    %207 = arith.negf %206 : vector<8x128xf32>
    %208 = math.exp %207 : vector<8x128xf32>
    %cst_26 = arith.constant 1.000000e+00 : f32
    %209 = vector.broadcast %cst_26 : f32 to vector<8x128xf32>
    %210 = arith.addf %209, %208 : vector<8x128xf32>
    %211 = arith.divf %209, %210 : vector<8x128xf32>
    %212 = vector.extract_strided_slice %211 {offsets = [0, 0], sizes = [8, 32], strides = [1, 1]} : vector<8x128xf32> to vector<8x32xf32>
    %213 = vector.extract_strided_slice %211 {offsets = [0, 32], sizes = [8, 32], strides = [1, 1]} : vector<8x128xf32> to vector<8x32xf32>
    %214 = vector.extract_strided_slice %211 {offsets = [0, 96], sizes = [8, 32], strides = [1, 1]} : vector<8x128xf32> to vector<8x32xf32>
    %215 = vector.extract_strided_slice %206 {offsets = [0, 64], sizes = [8, 32], strides = [1, 1]} : vector<8x128xf32> to vector<8x32xf32>
    %216 = math.tanh %215 : vector<8x32xf32>
    %217 = arith.mulf %213, %180 : vector<8x32xf32>
    %218 = arith.mulf %212, %216 : vector<8x32xf32>
    %219 = arith.addf %217, %218 : vector<8x32xf32>
    %220 = math.tanh %219 : vector<8x32xf32>
    %221 = arith.mulf %214, %220 : vector<8x32xf32>
    %222 = tpu.concatenate %221, %204 in 1 : vector<8x32xf32>, vector<8x32xf32> -> vector<8x64xf32>
    %223 = arith.truncf %222 : vector<8x64xf32> to vector<8x64xbf16>
    %cst_27 = arith.constant dense<0.000000e+00> : vector<8x256xf32>
    %224 = tpu.matmul %223, %0, %cst_27 {dimension_numbers = #tpu.dot_dimension_numbers<[1], [0], [0], [1], [0, 0, 1, 1], [], []>} : vector<8x64xbf16>, vector<64x256xbf16>, vector<8x256xf32> -> vector<8x256xf32>
    %225 = vector.extract_strided_slice %224 {offsets = [0, 0], sizes = [8, 128], strides = [1, 1]} : vector<8x256xf32> to vector<8x128xf32>
    %226 = vector.broadcast %1 : vector<1x128xf32> to vector<8x128xf32>
    %227 = arith.addf %225, %226 : vector<8x128xf32>
    %228 = vector.extract_strided_slice %224 {offsets = [0, 128], sizes = [8, 128], strides = [1, 1]} : vector<8x256xf32> to vector<8x128xf32>
    %229 = arith.negf %227 : vector<8x128xf32>
    %230 = math.exp %229 : vector<8x128xf32>
    %cst_28 = arith.constant 1.000000e+00 : f32
    %231 = vector.broadcast %cst_28 : f32 to vector<8x128xf32>
    %232 = arith.addf %231, %230 : vector<8x128xf32>
    %233 = arith.divf %231, %232 : vector<8x128xf32>
    %234 = vector.extract_strided_slice %233 {offsets = [0, 0], sizes = [8, 32], strides = [1, 1]} : vector<8x128xf32> to vector<8x32xf32>
    %235 = vector.extract_strided_slice %233 {offsets = [0, 32], sizes = [8, 32], strides = [1, 1]} : vector<8x128xf32> to vector<8x32xf32>
    %236 = vector.extract_strided_slice %233 {offsets = [0, 96], sizes = [8, 32], strides = [1, 1]} : vector<8x128xf32> to vector<8x32xf32>
    %237 = vector.extract_strided_slice %227 {offsets = [0, 64], sizes = [8, 32], strides = [1, 1]} : vector<8x128xf32> to vector<8x32xf32>
    %238 = math.tanh %237 : vector<8x32xf32>
    %239 = arith.mulf %235, %202 : vector<8x32xf32>
    %240 = arith.mulf %234, %238 : vector<8x32xf32>
    %241 = arith.addf %239, %240 : vector<8x32xf32>
    %242 = math.tanh %241 : vector<8x32xf32>
    %243 = arith.mulf %236, %242 : vector<8x32xf32>
    %244 = vector.extract_strided_slice %7 {offsets = [48, 0], sizes = [8, 128], strides = [1, 1]} : vector<64x128xf32> to vector<8x128xf32>
    %245 = arith.addf %244, %228 : vector<8x128xf32>
    %246 = arith.negf %245 : vector<8x128xf32>
    %247 = math.exp %246 : vector<8x128xf32>
    %cst_29 = arith.constant 1.000000e+00 : f32
    %248 = vector.broadcast %cst_29 : f32 to vector<8x128xf32>
    %249 = arith.addf %248, %247 : vector<8x128xf32>
    %250 = arith.divf %248, %249 : vector<8x128xf32>
    %251 = vector.extract_strided_slice %250 {offsets = [0, 0], sizes = [8, 32], strides = [1, 1]} : vector<8x128xf32> to vector<8x32xf32>
    %252 = vector.extract_strided_slice %250 {offsets = [0, 32], sizes = [8, 32], strides = [1, 1]} : vector<8x128xf32> to vector<8x32xf32>
    %253 = vector.extract_strided_slice %250 {offsets = [0, 96], sizes = [8, 32], strides = [1, 1]} : vector<8x128xf32> to vector<8x32xf32>
    %254 = vector.extract_strided_slice %245 {offsets = [0, 64], sizes = [8, 32], strides = [1, 1]} : vector<8x128xf32> to vector<8x32xf32>
    %255 = math.tanh %254 : vector<8x32xf32>
    %256 = arith.mulf %252, %219 : vector<8x32xf32>
    %257 = arith.mulf %251, %255 : vector<8x32xf32>
    %258 = arith.addf %256, %257 : vector<8x32xf32>
    %259 = math.tanh %258 : vector<8x32xf32>
    %260 = arith.mulf %253, %259 : vector<8x32xf32>
    %261 = tpu.concatenate %260, %243 in 1 : vector<8x32xf32>, vector<8x32xf32> -> vector<8x64xf32>
    %262 = arith.truncf %261 : vector<8x64xf32> to vector<8x64xbf16>
    %cst_30 = arith.constant dense<0.000000e+00> : vector<8x256xf32>
    %263 = tpu.matmul %262, %0, %cst_30 {dimension_numbers = #tpu.dot_dimension_numbers<[1], [0], [0], [1], [0, 0, 1, 1], [], []>} : vector<8x64xbf16>, vector<64x256xbf16>, vector<8x256xf32> -> vector<8x256xf32>
    %264 = vector.extract_strided_slice %263 {offsets = [0, 0], sizes = [8, 128], strides = [1, 1]} : vector<8x256xf32> to vector<8x128xf32>
    %265 = vector.broadcast %1 : vector<1x128xf32> to vector<8x128xf32>
    %266 = arith.addf %264, %265 : vector<8x128xf32>
    %267 = vector.extract_strided_slice %263 {offsets = [0, 128], sizes = [8, 128], strides = [1, 1]} : vector<8x256xf32> to vector<8x128xf32>
    %268 = arith.negf %266 : vector<8x128xf32>
    %269 = math.exp %268 : vector<8x128xf32>
    %cst_31 = arith.constant 1.000000e+00 : f32
    %270 = vector.broadcast %cst_31 : f32 to vector<8x128xf32>
    %271 = arith.addf %270, %269 : vector<8x128xf32>
    %272 = arith.divf %270, %271 : vector<8x128xf32>
    %273 = vector.extract_strided_slice %272 {offsets = [0, 0], sizes = [8, 32], strides = [1, 1]} : vector<8x128xf32> to vector<8x32xf32>
    %274 = vector.extract_strided_slice %272 {offsets = [0, 32], sizes = [8, 32], strides = [1, 1]} : vector<8x128xf32> to vector<8x32xf32>
    %275 = vector.extract_strided_slice %272 {offsets = [0, 96], sizes = [8, 32], strides = [1, 1]} : vector<8x128xf32> to vector<8x32xf32>
    %276 = vector.extract_strided_slice %266 {offsets = [0, 64], sizes = [8, 32], strides = [1, 1]} : vector<8x128xf32> to vector<8x32xf32>
    %277 = math.tanh %276 : vector<8x32xf32>
    %278 = arith.mulf %274, %241 : vector<8x32xf32>
    %279 = arith.mulf %273, %277 : vector<8x32xf32>
    %280 = arith.addf %278, %279 : vector<8x32xf32>
    %281 = math.tanh %280 : vector<8x32xf32>
    %282 = arith.mulf %275, %281 : vector<8x32xf32>
    %283 = vector.extract_strided_slice %7 {offsets = [56, 0], sizes = [8, 128], strides = [1, 1]} : vector<64x128xf32> to vector<8x128xf32>
    %284 = arith.addf %283, %267 : vector<8x128xf32>
    %285 = arith.negf %284 : vector<8x128xf32>
    %286 = math.exp %285 : vector<8x128xf32>
    %cst_32 = arith.constant 1.000000e+00 : f32
    %287 = vector.broadcast %cst_32 : f32 to vector<8x128xf32>
    %288 = arith.addf %287, %286 : vector<8x128xf32>
    %289 = arith.divf %287, %288 : vector<8x128xf32>
    %290 = vector.extract_strided_slice %289 {offsets = [0, 0], sizes = [8, 32], strides = [1, 1]} : vector<8x128xf32> to vector<8x32xf32>
    %291 = vector.extract_strided_slice %289 {offsets = [0, 32], sizes = [8, 32], strides = [1, 1]} : vector<8x128xf32> to vector<8x32xf32>
    %292 = vector.extract_strided_slice %289 {offsets = [0, 96], sizes = [8, 32], strides = [1, 1]} : vector<8x128xf32> to vector<8x32xf32>
    %293 = vector.extract_strided_slice %284 {offsets = [0, 64], sizes = [8, 32], strides = [1, 1]} : vector<8x128xf32> to vector<8x32xf32>
    %294 = math.tanh %293 : vector<8x32xf32>
    %295 = arith.mulf %291, %258 : vector<8x32xf32>
    %296 = arith.mulf %290, %294 : vector<8x32xf32>
    %297 = arith.addf %295, %296 : vector<8x32xf32>
    %298 = math.tanh %297 : vector<8x32xf32>
    %299 = arith.mulf %292, %298 : vector<8x32xf32>
    %300 = tpu.concatenate %299, %282 in 1 : vector<8x32xf32>, vector<8x32xf32> -> vector<8x64xf32>
    %301 = arith.truncf %300 : vector<8x64xf32> to vector<8x64xbf16>
    %cst_33 = arith.constant dense<0.000000e+00> : vector<8x256xf32>
    %302 = tpu.matmul %301, %0, %cst_33 {dimension_numbers = #tpu.dot_dimension_numbers<[1], [0], [0], [1], [0, 0, 1, 1], [], []>} : vector<8x64xbf16>, vector<64x256xbf16>, vector<8x256xf32> -> vector<8x256xf32>
    %303 = vector.extract_strided_slice %302 {offsets = [0, 0], sizes = [8, 128], strides = [1, 1]} : vector<8x256xf32> to vector<8x128xf32>
    %304 = vector.broadcast %1 : vector<1x128xf32> to vector<8x128xf32>
    %305 = arith.addf %303, %304 : vector<8x128xf32>
    %306 = arith.negf %305 : vector<8x128xf32>
    %307 = math.exp %306 : vector<8x128xf32>
    %cst_34 = arith.constant 1.000000e+00 : f32
    %308 = vector.broadcast %cst_34 : f32 to vector<8x128xf32>
    %309 = arith.addf %308, %307 : vector<8x128xf32>
    %310 = arith.divf %308, %309 : vector<8x128xf32>
    %311 = vector.extract_strided_slice %310 {offsets = [0, 0], sizes = [8, 32], strides = [1, 1]} : vector<8x128xf32> to vector<8x32xf32>
    %312 = vector.extract_strided_slice %310 {offsets = [0, 32], sizes = [8, 32], strides = [1, 1]} : vector<8x128xf32> to vector<8x32xf32>
    %313 = vector.extract_strided_slice %310 {offsets = [0, 96], sizes = [8, 32], strides = [1, 1]} : vector<8x128xf32> to vector<8x32xf32>
    %314 = vector.extract_strided_slice %305 {offsets = [0, 64], sizes = [8, 32], strides = [1, 1]} : vector<8x128xf32> to vector<8x32xf32>
    %315 = math.tanh %314 : vector<8x32xf32>
    %316 = arith.mulf %312, %280 : vector<8x32xf32>
    %317 = arith.mulf %311, %315 : vector<8x32xf32>
    %318 = arith.addf %316, %317 : vector<8x32xf32>
    %319 = math.tanh %318 : vector<8x32xf32>
    %320 = arith.mulf %313, %319 : vector<8x32xf32>
    %321 = arith.truncf %320 : vector<8x32xf32> to vector<8x32xbf16>
    %c0_35 = arith.constant 0 : index
    %c0_36 = arith.constant 0 : index
    %322 = vector.load %arg5[%c0_35, %c0_36] : memref<32x128xbf16, #tpu.memory_space<vmem>>, vector<32x128xbf16>
    %cst_37 = arith.constant dense<0.000000e+00> : vector<8x128xf32>
    %323 = tpu.matmul %321, %322, %cst_37 {dimension_numbers = #tpu.dot_dimension_numbers<[1], [0], [0], [1], [0, 0, 1, 1], [], []>} : vector<8x32xbf16>, vector<32x128xbf16>, vector<8x128xf32> -> vector<8x128xf32>
    %c0_38 = arith.constant 0 : index
    %c0_39 = arith.constant 0 : index
    %324 = vector.load %arg6[%c0_38, %c0_39] : memref<1x128xf32, #tpu.memory_space<vmem>>, vector<1x128xf32>
    %325 = vector.broadcast %324 : vector<1x128xf32> to vector<8x128xf32>
    %326 = arith.addf %323, %325 : vector<8x128xf32>
    %cst_40 = arith.constant dense<0xFF800000> : vector<8xf32>
    %327 = vector.multi_reduction <maximumf>, %326, %cst_40 [1] : vector<8x128xf32> to vector<8xf32>
    %328 = vector.shape_cast %327 : vector<8xf32> to vector<8x1xf32>
    %329 = vector.broadcast %328 : vector<8x1xf32> to vector<8x128xf32>
    %330 = arith.subf %326, %329 : vector<8x128xf32>
    %331 = math.exp %330 : vector<8x128xf32>
    %cst_41 = arith.constant dense<0.000000e+00> : vector<8xf32>
    %332 = vector.multi_reduction <add>, %331, %cst_41 [1] : vector<8x128xf32> to vector<8xf32>
    %333 = vector.shape_cast %332 : vector<8xf32> to vector<8x1xf32>
    %334 = vector.broadcast %333 : vector<8x1xf32> to vector<8x128xf32>
    %335 = arith.divf %331, %334 : vector<8x128xf32>
    %c0_42 = arith.constant 0 : index
    %c0_43 = arith.constant 0 : index
    %336 = vector.load %arg7[%c0_42, %c0_43] : memref<8x128xf32, #tpu.memory_space<vmem>>, vector<8x128xf32>
    tpu.vector_store %arg7[%c0_42, %c0_43], %335 {strides = array<i32>} : memref<8x128xf32, #tpu.memory_space<vmem>>, vector<8x128xf32>,
    return
  }
}

</mosaic_0001>

<llo_original>
// kernel: lstm_net_forward.1
$region0: #{lstm_net_forward.1}
  #allocation0 [shape = 'u32[]', space=smem, size = 0x4, offset = 0x4, fixed_abs, tag = 'smem constant byte address 0x4 - core index']
  #allocation1 [shape = 'u32[72,128]{1,0:T(1,128)}', space=vmem, size = 0x9000, scoped, tag = 'internal scratch']
  %s0 = inlined_call_operand.vmem [shape: bf16[64,16], index: 0, kind: input, shape index: {}]
  %s1 = inlined_call_operand.vmem [shape: bf16[16,128], index: 1, kind: input, shape index: {}]
  %s2 = inlined_call_operand.vmem [shape: f32[1,128], index: 2, kind: input, shape index: {}]
  %s3 = inlined_call_operand.vmem [shape: bf16[64,256], index: 3, kind: input, shape index: {}]
  %s4 = inlined_call_operand.vmem [shape: f32[1,128], index: 4, kind: input, shape index: {}]
  %s5 = inlined_call_operand.vmem [shape: bf16[32,128], index: 5, kind: input, shape index: {}]
  %s6 = inlined_call_operand.vmem [shape: f32[1,128], index: 6, kind: input, shape index: {}]
  %s7 = inlined_call_operand.vmem [shape: f32[8,128], index: 7, kind: output, shape index: {}]
  %s8 = sld [smem:[#allocation0]]
  $region38: #{lstm_net_forward.1} parent=0
    _
  %s10 = ssub.s32 1, %s8
  %s11 = scalar_select 0, %s10, %s8
  // Predicated region
  $region2: #{lstm_net_forward.1} parent=0 // pred_check
    _
  $region3: #{lstm_net_forward.1} parent=0 // pred_check_branch
    %13 = sbr.rel (0) target = $region5
  $region4: #{lstm_net_forward.1} parent=0 // pred_region
    _
  $region5: #{lstm_net_forward.1} parent=0 // pred_fallthru
    _
  // Predicated region
  $region6: #{lstm_net_forward.1} parent=0 // pred_check
    _
  $region7: #{lstm_net_forward.1} parent=0 // pred_check_branch
    %15 = sbr.rel (0) target = $region9
  $region8: #{lstm_net_forward.1} parent=0 // pred_region
    _
  $region9: #{lstm_net_forward.1} parent=0 // pred_fallthru
    _
  // Predicated region
  $region10: #{lstm_net_forward.1} parent=0 // pred_check
    _
  $region11: #{lstm_net_forward.1} parent=0 // pred_check_branch
    %17 = sbr.rel (0) target = $region13
  $region12: #{lstm_net_forward.1} parent=0 // pred_region
    _
  $region13: #{lstm_net_forward.1} parent=0 // pred_fallthru
    _
  // Predicated region
  $region14: #{lstm_net_forward.1} parent=0 // pred_check
    _
  $region15: #{lstm_net_forward.1} parent=0 // pred_check_branch
    %19 = sbr.rel (0) target = $region17
  $region16: #{lstm_net_forward.1} parent=0 // pred_region
    _
  $region17: #{lstm_net_forward.1} parent=0 // pred_fallthru
    _
  // Predicated region
  $region18: #{lstm_net_forward.1} parent=0 // pred_check
    _
  $region19: #{lstm_net_forward.1} parent=0 // pred_check_branch
    %21 = sbr.rel (0) target = $region21
  $region20: #{lstm_net_forward.1} parent=0 // pred_region
    _
  $region21: #{lstm_net_forward.1} parent=0 // pred_fallthru
    _
  // Predicated region
  $region22: #{lstm_net_forward.1} parent=0 // pred_check
    _
  $region23: #{lstm_net_forward.1} parent=0 // pred_check_branch
    %23 = sbr.rel (0) target = $region25
  $region24: #{lstm_net_forward.1} parent=0 // pred_region
    _
  $region25: #{lstm_net_forward.1} parent=0 // pred_fallthru
    _
  // Predicated region
  $region26: #{lstm_net_forward.1} parent=0 // pred_check
    _
  $region27: #{lstm_net_forward.1} parent=0 // pred_check_branch
    %25 = sbr.rel (0) target = $region29
  $region28: #{lstm_net_forward.1} parent=0 // pred_region
    _
  $region29: #{lstm_net_forward.1} parent=0 // pred_fallthru
    _
  %v27 = vld [vmem:[%s3] sm:$0xff]
  %v28 = vld [vmem:[%s3 + $0x8] sm:$0xff]
  %v29 = vld [vmem:[%s3 + $0x10] sm:$0xff]
  %v30 = vld [vmem:[%s3 + $0x18] sm:$0xff]
  %v31 = vld [vmem:[%s3 + $0x20] sm:$0xff]
  %v32 = vld [vmem:[%s3 + $0x28] sm:$0xff]
  %v33 = vld [vmem:[%s3 + $0x30] sm:$0xff]
  %v34 = vld [vmem:[%s3 + $0x38] sm:$0xff]
  %v35 = vld [vmem:[%s4] sm:$0x1]
  %v36 = vld [vmem:[%s0] sm:$0xf]
  %v37 = vld [vmem:[%s0 + $0x4] sm:$0xf]
  %v38 = vld [vmem:[%s0 + $0x8] sm:$0xf]
  %v39 = vld [vmem:[%s0 + $0xc] sm:$0xf]
  %v40 = vld [vmem:[%s0 + $0x10] sm:$0xf]
  %v41 = vld [vmem:[%s0 + $0x14] sm:$0xf]
  %v42 = vld [vmem:[%s0 + $0x18] sm:$0xf]
  %v43 = vld [vmem:[%s0 + $0x1c] sm:$0xf]
  %v44 = vld [vmem:[%s1] sm:$0xf]
  %v45 = vld [vmem:[%s1 + $0x4] sm:$0xf]
  %v46 = vld [vmem:[%s2] sm:$0x1]
  %v48 = vperm.slane %v46, 0
  %v58 = vunpack.c.l.b16 %v36
  %v59 = vunpack.c.l.b16 %v37
  %v60 = vunpack.c.l.b16 %v38
  %v61 = vunpack.c.l.b16 %v39
  %v62 = vunpack.c.l.b16 %v40
  %v63 = vunpack.c.l.b16 %v41
  %v64 = vunpack.c.l.b16 %v42
  %v65 = vunpack.c.l.b16 %v43
  %v66 = vpack.c.b16 %v59, %v58
  %v67 = vpack.c.b16 %v61, %v60
  %v68 = vpack.c.b16 %v63, %v62
  %v69 = vpack.c.b16 %v65, %v64
  %v72 = vunpack.c.l.b16 %v44
  %v73 = vunpack.c.l.b16 %v45
  %v74 = vpack.c.b16 %v73, %v72
  %vm76 = vcmask 130048
  %v78 = vsel %vm76, %v66, 0
  %v81 = vsel %vm76, %v67, 0
  %v84 = vsel %vm76, %v68, 0
  %v87 = vsel %vm76, %v69, 0
  %89 = vmatpush.bf16.msra.mxu0 0
  %90 = vmatpush.bf16.msra.mxu0 0
  %91 = vmatpush.bf16.msra.mxu0 0
  %92 = vmatpush.bf16.msra.mxu0 0
  %93 = vmatpush.bf16.msra.mxu0 0
  %94 = vmatpush.bf16.msra.mxu0 0
  %95 = vmatpush.bf16.msra.mxu0 0
  %96 = vmatpush.bf16.msra.mxu0 %v74
  %97 = vmatmul.bf16.gmra.mxu0 %v78
  %v98 = vpop.f32.mrf.mxu0
  %v99 = vadd.f32 %v48, %v98
  %v100 = vpop.f32.mrf.mxu0
  %v101 = vadd.f32 %v48, %v100
  %102 = vmatmul.bf16.gmra.mxu0 %v81
  %v103 = vpop.f32.mrf.mxu0
  %v104 = vadd.f32 %v48, %v103
  %v105 = vpop.f32.mrf.mxu0
  %v106 = vadd.f32 %v48, %v105
  %107 = vmatmul.bf16.gmra.mxu0 %v84
  %v108 = vpop.f32.mrf.mxu0
  %v109 = vadd.f32 %v48, %v108
  %v110 = vpop.f32.mrf.mxu0
  %v111 = vadd.f32 %v48, %v110
  %112 = vmatmul.bf16.gmra.mxu0 %v87
  %v113 = vpop.f32.mrf.mxu0
  %v114 = vadd.f32 %v48, %v113
  %v115 = vpop.f32.mrf.mxu0
  %v116 = vadd.f32 %v48, %v115
  %117 = vdwg.mxu0
  %v118 = vadd.f32 %v99, 0.0
  %v119 = vxor.u32 %v118, 2147483648
  %v120 = vmul.f32 %v119, 1.442695
  %v121 = vpow.pop %v120
  %v122 = vadd.f32 %v121, 1.0
  %v123 = vrcp.pop %v122
  %v124 = vmul.f32 %v122, %v123
  %v125 = vsub.f32 1.0, %v124
  %v126 = vmul.f32 %v123, %v125
  %v127 = vadd.f32 %v123, %v126
  %vm128 = vweird.f32 %v122
  %vm129 = vweird.f32 %v123
  %vm130 = vmor %vm128, %vm129
  %v131 = vsel %vm130, %v123, %v127
  %v132 = vand.u32 2147483647, %v122
  %vm133 = vcmp.eq.f32.partialorder %v132, 8.507059e+37
  %v134 = vand.u32 %v122, 2147483648
  %v135 = vor.u32 1.1754944e-38, %v134
  %v136 = vsel %vm133, %v135, %v131
  %v137 = vmul.f32 1.0, %v136
  %v138 = vtanh.pop %v118
  %v139 = vmul.f32 %v137, 0.0
  %141 = vrot.lane.b32.xlu0 %v138, 64
  %v142 = vpop.permute.xlu0 %141
  %v144 = vmul.f32 %v137, %v142
  %146 = vrot.lane.b32.xlu0 %v144, 32
  %v147 = vpop.permute.xlu0 %146
  %v149 = vadd.f32 %v139, %v147
  %v150 = vtanh.pop %v149
  %152 = vrot.lane.b32.xlu0 %v150, 64
  %v153 = vpop.permute.xlu0 %152
  %v155 = vmul.f32 %v137, %v153
  %157 = vrot.lane.b32.xlu0 %v155, 32
  %v158 = vpop.permute.xlu0 %157
  %vm160 = vcmask 261120
  %v161 = vsel %vm160, %v158, 0.0
  %v162 = vpack.c.bf16 %v161, %v161
  %v171 = vunpack.c.l.b16 %v27
  %v172 = vunpack.c.h.b16 %v27
  %v173 = vunpack.c.l.b16 %v28
  %v174 = vunpack.c.h.b16 %v28
  %v175 = vunpack.c.l.b16 %v29
  %v176 = vunpack.c.h.b16 %v29
  %v177 = vunpack.c.l.b16 %v30
  %v178 = vunpack.c.h.b16 %v30
  %v179 = vunpack.c.l.b16 %v31
  %v180 = vunpack.c.h.b16 %v31
  %v181 = vunpack.c.l.b16 %v32
  %v182 = vunpack.c.h.b16 %v32
  %v183 = vunpack.c.l.b16 %v33
  %v184 = vunpack.c.h.b16 %v33
  %v185 = vunpack.c.l.b16 %v34
  %v186 = vunpack.c.h.b16 %v34
  %v187 = vpack.c.b16 %v173, %v171
  %v188 = vpack.c.b16 %v174, %v172
  %v189 = vpack.c.b16 %v177, %v175
  %v190 = vpack.c.b16 %v178, %v176
  %v191 = vpack.c.b16 %v181, %v179
  %v192 = vpack.c.b16 %v182, %v180
  %v193 = vpack.c.b16 %v185, %v183
  %v194 = vpack.c.b16 %v186, %v184
  %vm203 = vcmask 523264
  %v205 = vsel %vm203, %v162, 0
  %207 = vmatpush.bf16.msra.mxu0 0
  %208 = vmatpush.bf16.msra.mxu0 0
  %209 = vmatpush.bf16.msra.mxu0 0
  %210 = vmatpush.bf16.msra.mxu0 0
  %211 = vmatpush.bf16.msra.mxu0 %v193
  %212 = vmatpush.bf16.msra.mxu0 %v191
  %213 = vmatpush.bf16.msra.mxu0 %v189
  %214 = vmatpush.bf16.msra.mxu0 %v187
  %215 = vmatmul.bf16.gmra.mxu0 %v205
  %v216 = vpop.f32.mrf.mxu0
  %v217 = vadd.f32 0.0, %v216
  %v218 = vpop.f32.mrf.mxu0
  %219 = vdwg.mxu0
  %220 = vmatpush.bf16.msra.mxu0 0
  %221 = vmatpush.bf16.msra.mxu0 0
  %222 = vmatpush.bf16.msra.mxu0 0
  %223 = vmatpush.bf16.msra.mxu0 0
  %224 = vmatpush.bf16.msra.mxu0 %v194
  %225 = vmatpush.bf16.msra.mxu0 %v192
  %226 = vmatpush.bf16.msra.mxu0 %v190
  %227 = vmatpush.bf16.msra.mxu0 %v188
  %228 = vmatmul.bf16.gmra.mxu0 %v205
  %v229 = vpop.f32.mrf.mxu0
  %v230 = vadd.f32 0.0, %v229
  %v231 = vpop.f32.mrf.mxu0
  %232 = vdwg.mxu0
  %v234 = vperm.slane %v35, 0
  %v236 = vadd.f32 %v217, %v234
  %v237 = vxor.u32 %v236, 2147483648
  %v238 = vmul.f32 %v237, 1.442695
  %v239 = vpow.pop %v238
  %v240 = vadd.f32 %v239, 1.0
  %v241 = vrcp.pop %v240
  %v242 = vmul.f32 %v240, %v241
  %v243 = vsub.f32 1.0, %v242
  %v244 = vmul.f32 %v241, %v243
  %v245 = vadd.f32 %v241, %v244
  %vm246 = vweird.f32 %v240
  %vm247 = vweird.f32 %v241
  %vm248 = vmor %vm246, %vm247
  %v249 = vsel %vm248, %v241, %v245
  %v250 = vand.u32 2147483647, %v240
  %vm251 = vcmp.eq.f32.partialorder %v250, 8.507059e+37
  %v252 = vand.u32 %v240, 2147483648
  %v253 = vor.u32 1.1754944e-38, %v252
  %v254 = vsel %vm251, %v253, %v249
  %v255 = vmul.f32 1.0, %v254
  %v256 = vtanh.pop %v236
  %v257 = vmul.f32 %v255, 0.0
  %259 = vrot.lane.b32.xlu0 %v256, 64
  %v260 = vpop.permute.xlu0 %259
  %v262 = vmul.f32 %v255, %v260
  %264 = vrot.lane.b32.xlu0 %v262, 32
  %v265 = vpop.permute.xlu0 %264
  %v267 = vadd.f32 %v257, %v265
  %v268 = vtanh.pop %v267
  %270 = vrot.lane.b32.xlu0 %v268, 64
  %v271 = vpop.permute.xlu0 %270
  %v273 = vmul.f32 %v255, %v271
  %v274 = vadd.f32 %v101, %v230
  %v275 = vxor.u32 %v274, 2147483648
  %v276 = vmul.f32 %v275, 1.442695
  %v277 = vpow.pop %v276
  %v278 = vadd.f32 %v277, 1.0
  %v279 = vrcp.pop %v278
  %v280 = vmul.f32 %v278, %v279
  %v281 = vsub.f32 1.0, %v280
  %v282 = vmul.f32 %v279, %v281
  %v283 = vadd.f32 %v279, %v282
  %vm284 = vweird.f32 %v278
  %vm285 = vweird.f32 %v279
  %vm286 = vmor %vm284, %vm285
  %v287 = vsel %vm286, %v279, %v283
  %v288 = vand.u32 2147483647, %v278
  %vm289 = vcmp.eq.f32.partialorder %v288, 8.507059e+37
  %v290 = vand.u32 %v278, 2147483648
  %v291 = vor.u32 1.1754944e-38, %v290
  %v292 = vsel %vm289, %v291, %v287
  %v293 = vmul.f32 1.0, %v292
  %v294 = vtanh.pop %v274
  %v295 = vmul.f32 %v293, %v149
  %297 = vrot.lane.b32.xlu0 %v294, 64
  %v298 = vpop.permute.xlu0 %297
  %v300 = vmul.f32 %v293, %v298
  %302 = vrot.lane.b32.xlu0 %v300, 32
  %v303 = vpop.permute.xlu0 %302
  %v305 = vadd.f32 %v295, %v303
  %v306 = vtanh.pop %v305
  %308 = vrot.lane.b32.xlu0 %v306, 64
  %v309 = vpop.permute.xlu0 %308
  %v311 = vmul.f32 %v293, %v309
  %313 = vrot.lane.b32.xlu0 %v311, 32
  %v314 = vpop.permute.xlu0 %313
  %317 = vrot.lane.b32.xlu0 %v273, 64
  %v318 = vpop.permute.xlu0 %317
  %v320 = vsel %vm160, %v314, %v318
  %v321 = vpack.c.bf16 %v320, %v320
  %v323 = vsel %vm203, %v321, 0
  %325 = vmatpush.bf16.msra.mxu0 0
  %326 = vmatpush.bf16.msra.mxu0 0
  %327 = vmatpush.bf16.msra.mxu0 0
  %328 = vmatpush.bf16.msra.mxu0 0
  %329 = vmatpush.bf16.msra.mxu0 %v193
  %330 = vmatpush.bf16.msra.mxu0 %v191
  %331 = vmatpush.bf16.msra.mxu0 %v189
  %332 = vmatpush.bf16.msra.mxu0 %v187
  %333 = vmatmul.bf16.gmra.mxu0 %v323
  %v334 = vpop.f32.mrf.mxu0
  %v335 = vadd.f32 0.0, %v334
  %v336 = vpop.f32.mrf.mxu0
  %337 = vdwg.mxu0
  %338 = vmatpush.bf16.msra.mxu0 0
  %339 = vmatpush.bf16.msra.mxu0 0
  %340 = vmatpush.bf16.msra.mxu0 0
  %341 = vmatpush.bf16.msra.mxu0 0
  %342 = vmatpush.bf16.msra.mxu0 %v194
  %343 = vmatpush.bf16.msra.mxu0 %v192
  %344 = vmatpush.bf16.msra.mxu0 %v190
  %345 = vmatpush.bf16.msra.mxu0 %v188
  %346 = vmatmul.bf16.gmra.mxu0 %v323
  %v347 = vpop.f32.mrf.mxu0
  %v348 = vadd.f32 0.0, %v347
  %v349 = vpop.f32.mrf.mxu0
  %350 = vdwg.mxu0
  %v351 = vadd.f32 %v335, %v234
  %v352 = vxor.u32 %v351, 2147483648
  %v353 = vmul.f32 %v352, 1.442695
  %v354 = vpow.pop %v353
  %v355 = vadd.f32 %v354, 1.0
  %v356 = vrcp.pop %v355
  %v357 = vmul.f32 %v355, %v356
  %v358 = vsub.f32 1.0, %v357
  %v359 = vmul.f32 %v356, %v358
  %v360 = vadd.f32 %v356, %v359
  %vm361 = vweird.f32 %v355
  %vm362 = vweird.f32 %v356
  %vm363 = vmor %vm361, %vm362
  %v364 = vsel %vm363, %v356, %v360
  %v365 = vand.u32 2147483647, %v355
  %vm366 = vcmp.eq.f32.partialorder %v365, 8.507059e+37
  %v367 = vand.u32 %v355, 2147483648
  %v368 = vor.u32 1.1754944e-38, %v367
  %v369 = vsel %vm366, %v368, %v364
  %v370 = vmul.f32 1.0, %v369
  %v371 = vtanh.pop %v351
  %v372 = vmul.f32 %v370, %v267
  %374 = vrot.lane.b32.xlu0 %v371, 64
  %v375 = vpop.permute.xlu0 %374
  %v377 = vmul.f32 %v370, %v375
  %379 = vrot.lane.b32.xlu0 %v377, 32
  %v380 = vpop.permute.xlu0 %379
  %v382 = vadd.f32 %v372, %v380
  %v383 = vtanh.pop %v382
  %385 = vrot.lane.b32.xlu0 %v383, 64
  %v386 = vpop.permute.xlu0 %385
  %v388 = vmul.f32 %v370, %v386
  %v389 = vadd.f32 %v104, %v348
  %v390 = vxor.u32 %v389, 2147483648
  %v391 = vmul.f32 %v390, 1.442695
  %v392 = vpow.pop %v391
  %v393 = vadd.f32 %v392, 1.0
  %v394 = vrcp.pop %v393
  %v395 = vmul.f32 %v393, %v394
  %v396 = vsub.f32 1.0, %v395
  %v397 = vmul.f32 %v394, %v396
  %v398 = vadd.f32 %v394, %v397
  %vm399 = vweird.f32 %v393
  %vm400 = vweird.f32 %v394
  %vm401 = vmor %vm399, %vm400
  %v402 = vsel %vm401, %v394, %v398
  %v403 = vand.u32 2147483647, %v393
  %vm404 = vcmp.eq.f32.partialorder %v403, 8.507059e+37
  %v405 = vand.u32 %v393, 2147483648
  %v406 = vor.u32 1.1754944e-38, %v405
  %v407 = vsel %vm404, %v406, %v402
  %v408 = vmul.f32 1.0, %v407
  %v409 = vtanh.pop %v389
  %v410 = vmul.f32 %v408, %v305
  %412 = vrot.lane.b32.xlu0 %v409, 64
  %v413 = vpop.permute.xlu0 %412
  %v415 = vmul.f32 %v408, %v413
  %417 = vrot.lane.b32.xlu0 %v415, 32
  %v418 = vpop.permute.xlu0 %417
  %v420 = vadd.f32 %v410, %v418
  %v421 = vtanh.pop %v420
  %423 = vrot.lane.b32.xlu0 %v421, 64
  %v424 = vpop.permute.xlu0 %423
  %v426 = vmul.f32 %v408, %v424
  %428 = vrot.lane.b32.xlu0 %v426, 32
  %v429 = vpop.permute.xlu0 %428
  %432 = vrot.lane.b32.xlu0 %v388, 64
  %v433 = vpop.permute.xlu0 %432
  %v435 = vsel %vm160, %v429, %v433
  %v436 = vpack.c.bf16 %v435, %v435
  %v438 = vsel %vm203, %v436, 0
  %440 = vmatpush.bf16.msra.mxu0 0
  %441 = vmatpush.bf16.msra.mxu0 0
  %442 = vmatpush.bf16.msra.mxu0 0
  %443 = vmatpush.bf16.msra.mxu0 0
  %444 = vmatpush.bf16.msra.mxu0 %v193
  %445 = vmatpush.bf16.msra.mxu0 %v191
  %446 = vmatpush.bf16.msra.mxu0 %v189
  %447 = vmatpush.bf16.msra.mxu0 %v187
  %448 = vmatmul.bf16.gmra.mxu0 %v438
  %v449 = vpop.f32.mrf.mxu0
  %v450 = vadd.f32 0.0, %v449
  %v451 = vpop.f32.mrf.mxu0
  %452 = vdwg.mxu0
  %453 = vmatpush.bf16.msra.mxu0 0
  %454 = vmatpush.bf16.msra.mxu0 0
  %455 = vmatpush.bf16.msra.mxu0 0
  %456 = vmatpush.bf16.msra.mxu0 0
  %457 = vmatpush.bf16.msra.mxu0 %v194
  %458 = vmatpush.bf16.msra.mxu0 %v192
  %459 = vmatpush.bf16.msra.mxu0 %v190
  %460 = vmatpush.bf16.msra.mxu0 %v188
  %461 = vmatmul.bf16.gmra.mxu0 %v438
  %v462 = vpop.f32.mrf.mxu0
  %v463 = vadd.f32 0.0, %v462
  %v464 = vpop.f32.mrf.mxu0
  %465 = vdwg.mxu0
  %v466 = vadd.f32 %v450, %v234
  %v467 = vxor.u32 %v466, 2147483648
  %v468 = vmul.f32 %v467, 1.442695
  %v469 = vpow.pop %v468
  %v470 = vadd.f32 %v469, 1.0
  %v471 = vrcp.pop %v470
  %v472 = vmul.f32 %v470, %v471
  %v473 = vsub.f32 1.0, %v472
  %v474 = vmul.f32 %v471, %v473
  %v475 = vadd.f32 %v471, %v474
  %vm476 = vweird.f32 %v470
  %vm477 = vweird.f32 %v471
  %vm478 = vmor %vm476, %vm477
  %v479 = vsel %vm478, %v471, %v475
  %v480 = vand.u32 2147483647, %v470
  %vm481 = vcmp.eq.f32.partialorder %v480, 8.507059e+37
  %v482 = vand.u32 %v470, 2147483648
  %v483 = vor.u32 1.1754944e-38, %v482
  %v484 = vsel %vm481, %v483, %v479
  %v485 = vmul.f32 1.0, %v484
  %v486 = vtanh.pop %v466
  %v487 = vmul.f32 %v485, %v382
  %489 = vrot.lane.b32.xlu0 %v486, 64
  %v490 = vpop.permute.xlu0 %489
  %v492 = vmul.f32 %v485, %v490
  %494 = vrot.lane.b32.xlu0 %v492, 32
  %v495 = vpop.permute.xlu0 %494
  %v497 = vadd.f32 %v487, %v495
  %v498 = vtanh.pop %v497
  %500 = vrot.lane.b32.xlu0 %v498, 64
  %v501 = vpop.permute.xlu0 %500
  %v503 = vmul.f32 %v485, %v501
  %v504 = vadd.f32 %v106, %v463
  %v505 = vxor.u32 %v504, 2147483648
  %v506 = vmul.f32 %v505, 1.442695
  %v507 = vpow.pop %v506
  %v508 = vadd.f32 %v507, 1.0
  %v509 = vrcp.pop %v508
  %v510 = vmul.f32 %v508, %v509
  %v511 = vsub.f32 1.0, %v510
  %v512 = vmul.f32 %v509, %v511
  %v513 = vadd.f32 %v509, %v512
  %vm514 = vweird.f32 %v508
  %vm515 = vweird.f32 %v509
  %vm516 = vmor %vm514, %vm515
  %v517 = vsel %vm516, %v509, %v513
  %v518 = vand.u32 2147483647, %v508
  %vm519 = vcmp.eq.f32.partialorder %v518, 8.507059e+37
  %v520 = vand.u32 %v508, 2147483648
  %v521 = vor.u32 1.1754944e-38, %v520
  %v522 = vsel %vm519, %v521, %v517
  %v523 = vmul.f32 1.0, %v522
  %v524 = vtanh.pop %v504
  %v525 = vmul.f32 %v523, %v420
  %527 = vrot.lane.b32.xlu0 %v524, 64
  %v528 = vpop.permute.xlu0 %527
  %v530 = vmul.f32 %v523, %v528
  %532 = vrot.lane.b32.xlu0 %v530, 32
  %v533 = vpop.permute.xlu0 %532
  %v535 = vadd.f32 %v525, %v533
  %v536 = vtanh.pop %v535
  %538 = vrot.lane.b32.xlu0 %v536, 64
  %v539 = vpop.permute.xlu0 %538
  %v541 = vmul.f32 %v523, %v539
  %543 = vrot.lane.b32.xlu0 %v541, 32
  %v544 = vpop.permute.xlu0 %543
  %547 = vrot.lane.b32.xlu0 %v503, 64
  %v548 = vpop.permute.xlu0 %547
  %v550 = vsel %vm160, %v544, %v548
  %v551 = vpack.c.bf16 %v550, %v550
  %v553 = vsel %vm203, %v551, 0
  %555 = vmatpush.bf16.msra.mxu0 0
  %556 = vmatpush.bf16.msra.mxu0 0
  %557 = vmatpush.bf16.msra.mxu0 0
  %558 = vmatpush.bf16.msra.mxu0 0
  %559 = vmatpush.bf16.msra.mxu0 %v193
  %560 = vmatpush.bf16.msra.mxu0 %v191
  %561 = vmatpush.bf16.msra.mxu0 %v189
  %562 = vmatpush.bf16.msra.mxu0 %v187
  %563 = vmatmul.bf16.gmra.mxu0 %v553
  %v564 = vpop.f32.mrf.mxu0
  %v565 = vadd.f32 0.0, %v564
  %v566 = vpop.f32.mrf.mxu0
  %567 = vdwg.mxu0
  %568 = vmatpush.bf16.msra.mxu0 0
  %569 = vmatpush.bf16.msra.mxu0 0
  %570 = vmatpush.bf16.msra.mxu0 0
  %571 = vmatpush.bf16.msra.mxu0 0
  %572 = vmatpush.bf16.msra.mxu0 %v194
  %573 = vmatpush.bf16.msra.mxu0 %v192
  %574 = vmatpush.bf16.msra.mxu0 %v190
  %575 = vmatpush.bf16.msra.mxu0 %v188
  %576 = vmatmul.bf16.gmra.mxu0 %v553
  %v577 = vpop.f32.mrf.mxu0
  %v578 = vadd.f32 0.0, %v577
  %v579 = vpop.f32.mrf.mxu0
  %580 = vdwg.mxu0
  %v581 = vadd.f32 %v565, %v234
  %v582 = vxor.u32 %v581, 2147483648
  %v583 = vmul.f32 %v582, 1.442695
  %v584 = vpow.pop %v583
  %v585 = vadd.f32 %v584, 1.0
  %v586 = vrcp.pop %v585
  %v587 = vmul.f32 %v585, %v586
  %v588 = vsub.f32 1.0, %v587
  %v589 = vmul.f32 %v586, %v588
  %v590 = vadd.f32 %v586, %v589
  %vm591 = vweird.f32 %v585
  %vm592 = vweird.f32 %v586
  %vm593 = vmor %vm591, %vm592
  %v594 = vsel %vm593, %v586, %v590
  %v595 = vand.u32 2147483647, %v585
  %vm596 = vcmp.eq.f32.partialorder %v595, 8.507059e+37
  %v597 = vand.u32 %v585, 2147483648
  %v598 = vor.u32 1.1754944e-38, %v597
  %v599 = vsel %vm596, %v598, %v594
  %v600 = vmul.f32 1.0, %v599
  %v601 = vtanh.pop %v581
  %v602 = vmul.f32 %v600, %v497
  %604 = vrot.lane.b32.xlu0 %v601, 64
  %v605 = vpop.permute.xlu0 %604
  %v607 = vmul.f32 %v600, %v605
  %609 = vrot.lane.b32.xlu0 %v607, 32
  %v610 = vpop.permute.xlu0 %609
  %v612 = vadd.f32 %v602, %v610
  %v613 = vtanh.pop %v612
  %615 = vrot.lane.b32.xlu0 %v613, 64
  %v616 = vpop.permute.xlu0 %615
  %v618 = vmul.f32 %v600, %v616
  %v619 = vadd.f32 %v109, %v578
  %v620 = vxor.u32 %v619, 2147483648
  %v621 = vmul.f32 %v620, 1.442695
  %v622 = vpow.pop %v621
  %v623 = vadd.f32 %v622, 1.0
  %v624 = vrcp.pop %v623
  %v625 = vmul.f32 %v623, %v624
  %v626 = vsub.f32 1.0, %v625
  %v627 = vmul.f32 %v624, %v626
  %v628 = vadd.f32 %v624, %v627
  %vm629 = vweird.f32 %v623
  %vm630 = vweird.f32 %v624
  %vm631 = vmor %vm629, %vm630
  %v632 = vsel %vm631, %v624, %v628
  %v633 = vand.u32 2147483647, %v623
  %vm634 = vcmp.eq.f32.partialorder %v633, 8.507059e+37
  %v635 = vand.u32 %v623, 2147483648
  %v636 = vor.u32 1.1754944e-38, %v635
  %v637 = vsel %vm634, %v636, %v632
  %v638 = vmul.f32 1.0, %v637
  %v639 = vtanh.pop %v619
  %v640 = vmul.f32 %v638, %v535
  %642 = vrot.lane.b32.xlu0 %v639, 64
  %v643 = vpop.permute.xlu0 %642
  %v645 = vmul.f32 %v638, %v643
  %647 = vrot.lane.b32.xlu0 %v645, 32
  %v648 = vpop.permute.xlu0 %647
  %v650 = vadd.f32 %v640, %v648
  %v651 = vtanh.pop %v650
  %653 = vrot.lane.b32.xlu0 %v651, 64
  %v654 = vpop.permute.xlu0 %653
  %v656 = vmul.f32 %v638, %v654
  %658 = vrot.lane.b32.xlu0 %v656, 32
  %v659 = vpop.permute.xlu0 %658
  %662 = vrot.lane.b32.xlu0 %v618, 64
  %v663 = vpop.permute.xlu0 %662
  %v665 = vsel %vm160, %v659, %v663
  %v666 = vpack.c.bf16 %v665, %v665
  %v668 = vsel %vm203, %v666, 0
  %670 = vmatpush.bf16.msra.mxu0 0
  %671 = vmatpush.bf16.msra.mxu0 0
  %672 = vmatpush.bf16.msra.mxu0 0
  %673 = vmatpush.bf16.msra.mxu0 0
  %674 = vmatpush.bf16.msra.mxu0 %v193
  %675 = vmatpush.bf16.msra.mxu0 %v191
  %676 = vmatpush.bf16.msra.mxu0 %v189
  %677 = vmatpush.bf16.msra.mxu0 %v187
  %678 = vmatmul.bf16.gmra.mxu0 %v668
  %v679 = vpop.f32.mrf.mxu0
  %v680 = vadd.f32 0.0, %v679
  %v681 = vpop.f32.mrf.mxu0
  %682 = vdwg.mxu0
  %683 = vmatpush.bf16.msra.mxu0 0
  %684 = vmatpush.bf16.msra.mxu0 0
  %685 = vmatpush.bf16.msra.mxu0 0
  %686 = vmatpush.bf16.msra.mxu0 0
  %687 = vmatpush.bf16.msra.mxu0 %v194
  %688 = vmatpush.bf16.msra.mxu0 %v192
  %689 = vmatpush.bf16.msra.mxu0 %v190
  %690 = vmatpush.bf16.msra.mxu0 %v188
  %691 = vmatmul.bf16.gmra.mxu0 %v668
  %v692 = vpop.f32.mrf.mxu0
  %v693 = vadd.f32 0.0, %v692
  %v694 = vpop.f32.mrf.mxu0
  %695 = vdwg.mxu0
  %v696 = vadd.f32 %v680, %v234
  %v697 = vxor.u32 %v696, 2147483648
  %v698 = vmul.f32 %v697, 1.442695
  %v699 = vpow.pop %v698
  %v700 = vadd.f32 %v699, 1.0
  %v701 = vrcp.pop %v700
  %v702 = vmul.f32 %v700, %v701
  %v703 = vsub.f32 1.0, %v702
  %v704 = vmul.f32 %v701, %v703
  %v705 = vadd.f32 %v701, %v704
  %vm706 = vweird.f32 %v700
  %vm707 = vweird.f32 %v701
  %vm708 = vmor %vm706, %vm707
  %v709 = vsel %vm708, %v701, %v705
  %v710 = vand.u32 2147483647, %v700
  %vm711 = vcmp.eq.f32.partialorder %v710, 8.507059e+37
  %v712 = vand.u32 %v700, 2147483648
  %v713 = vor.u32 1.1754944e-38, %v712
  %v714 = vsel %vm711, %v713, %v709
  %v715 = vmul.f32 1.0, %v714
  %v716 = vtanh.pop %v696
  %v717 = vmul.f32 %v715, %v612
  %719 = vrot.lane.b32.xlu0 %v716, 64
  %v720 = vpop.permute.xlu0 %719
  %v722 = vmul.f32 %v715, %v720
  %724 = vrot.lane.b32.xlu0 %v722, 32
  %v725 = vpop.permute.xlu0 %724
  %v727 = vadd.f32 %v717, %v725
  %v728 = vtanh.pop %v727
  %730 = vrot.lane.b32.xlu0 %v728, 64
  %v731 = vpop.permute.xlu0 %730
  %v733 = vmul.f32 %v715, %v731
  %v734 = vadd.f32 %v111, %v693
  %v735 = vxor.u32 %v734, 2147483648
  %v736 = vmul.f32 %v735, 1.442695
  %v737 = vpow.pop %v736
  %v738 = vadd.f32 %v737, 1.0
  %v739 = vrcp.pop %v738
  %v740 = vmul.f32 %v738, %v739
  %v741 = vsub.f32 1.0, %v740
  %v742 = vmul.f32 %v739, %v741
  %v743 = vadd.f32 %v739, %v742
  %vm744 = vweird.f32 %v738
  %vm745 = vweird.f32 %v739
  %vm746 = vmor %vm744, %vm745
  %v747 = vsel %vm746, %v739, %v743
  %v748 = vand.u32 2147483647, %v738
  %vm749 = vcmp.eq.f32.partialorder %v748, 8.507059e+37
  %v750 = vand.u32 %v738, 2147483648
  %v751 = vor.u32 1.1754944e-38, %v750
  %v752 = vsel %vm749, %v751, %v747
  %v753 = vmul.f32 1.0, %v752
  %v754 = vtanh.pop %v734
  %v755 = vmul.f32 %v753, %v650
  %757 = vrot.lane.b32.xlu0 %v754, 64
  %v758 = vpop.permute.xlu0 %757
  %v760 = vmul.f32 %v753, %v758
  %762 = vrot.lane.b32.xlu0 %v760, 32
  %v763 = vpop.permute.xlu0 %762
  %v765 = vadd.f32 %v755, %v763
  %v766 = vtanh.pop %v765
  %768 = vrot.lane.b32.xlu0 %v766, 64
  %v769 = vpop.permute.xlu0 %768
  %v771 = vmul.f32 %v753, %v769
  %773 = vrot.lane.b32.xlu0 %v771, 32
  %v774 = vpop.permute.xlu0 %773
  %777 = vrot.lane.b32.xlu0 %v733, 64
  %v778 = vpop.permute.xlu0 %777
  %v780 = vsel %vm160, %v774, %v778
  %v781 = vpack.c.bf16 %v780, %v780
  %v783 = vsel %vm203, %v781, 0
  %785 = vmatpush.bf16.msra.mxu0 0
  %786 = vmatpush.bf16.msra.mxu0 0
  %787 = vmatpush.bf16.msra.mxu0 0
  %788 = vmatpush.bf16.msra.mxu0 0
  %789 = vmatpush.bf16.msra.mxu0 %v193
  %790 = vmatpush.bf16.msra.mxu0 %v191
  %791 = vmatpush.bf16.msra.mxu0 %v189
  %792 = vmatpush.bf16.msra.mxu0 %v187
  %793 = vmatmul.bf16.gmra.mxu0 %v783
  %v794 = vpop.f32.mrf.mxu0
  %v795 = vadd.f32 0.0, %v794
  %v796 = vpop.f32.mrf.mxu0
  %797 = vdwg.mxu0
  %798 = vmatpush.bf16.msra.mxu0 0
  %799 = vmatpush.bf16.msra.mxu0 0
  %800 = vmatpush.bf16.msra.mxu0 0
  %801 = vmatpush.bf16.msra.mxu0 0
  %802 = vmatpush.bf16.msra.mxu0 %v194
  %803 = vmatpush.bf16.msra.mxu0 %v192
  %804 = vmatpush.bf16.msra.mxu0 %v190
  %805 = vmatpush.bf16.msra.mxu0 %v188
  %806 = vmatmul.bf16.gmra.mxu0 %v783
  %v807 = vpop.f32.mrf.mxu0
  %v808 = vadd.f32 0.0, %v807
  %v809 = vpop.f32.mrf.mxu0
  %810 = vdwg.mxu0
  %v811 = vadd.f32 %v795, %v234
  %v812 = vxor.u32 %v811, 2147483648
  %v813 = vmul.f32 %v812, 1.442695
  %v814 = vpow.pop %v813
  %v815 = vadd.f32 %v814, 1.0
  %v816 = vrcp.pop %v815
  %v817 = vmul.f32 %v815, %v816
  %v818 = vsub.f32 1.0, %v817
  %v819 = vmul.f32 %v816, %v818
  %v820 = vadd.f32 %v816, %v819
  %vm821 = vweird.f32 %v815
  %vm822 = vweird.f32 %v816
  %vm823 = vmor %vm821, %vm822
  %v824 = vsel %vm823, %v816, %v820
  %v825 = vand.u32 2147483647, %v815
  %vm826 = vcmp.eq.f32.partialorder %v825, 8.507059e+37
  %v827 = vand.u32 %v815, 2147483648
  %v828 = vor.u32 1.1754944e-38, %v827
  %v829 = vsel %vm826, %v828, %v824
  %v830 = vmul.f32 1.0, %v829
  %v831 = vtanh.pop %v811
  %v832 = vmul.f32 %v830, %v727
  %834 = vrot.lane.b32.xlu0 %v831, 64
  %v835 = vpop.permute.xlu0 %834
  %v837 = vmul.f32 %v830, %v835
  %839 = vrot.lane.b32.xlu0 %v837, 32
  %v840 = vpop.permute.xlu0 %839
  %v842 = vadd.f32 %v832, %v840
  %v843 = vtanh.pop %v842
  %845 = vrot.lane.b32.xlu0 %v843, 64
  %v846 = vpop.permute.xlu0 %845
  %v848 = vmul.f32 %v830, %v846
  %v849 = vadd.f32 %v114, %v808
  %v850 = vxor.u32 %v849, 2147483648
  %v851 = vmul.f32 %v850, 1.442695
  %v852 = vpow.pop %v851
  %v853 = vadd.f32 %v852, 1.0
  %v854 = vrcp.pop %v853
  %v855 = vmul.f32 %v853, %v854
  %v856 = vsub.f32 1.0, %v855
  %v857 = vmul.f32 %v854, %v856
  %v858 = vadd.f32 %v854, %v857
  %vm859 = vweird.f32 %v853
  %vm860 = vweird.f32 %v854
  %vm861 = vmor %vm859, %vm860
  %v862 = vsel %vm861, %v854, %v858
  %v863 = vand.u32 2147483647, %v853
  %vm864 = vcmp.eq.f32.partialorder %v863, 8.507059e+37
  %v865 = vand.u32 %v853, 2147483648
  %v866 = vor.u32 1.1754944e-38, %v865
  %v867 = vsel %vm864, %v866, %v862
  %v868 = vmul.f32 1.0, %v867
  %v869 = vtanh.pop %v849
  %v870 = vmul.f32 %v868, %v765
  %872 = vrot.lane.b32.xlu0 %v869, 64
  %v873 = vpop.permute.xlu0 %872
  %v875 = vmul.f32 %v868, %v873
  %877 = vrot.lane.b32.xlu0 %v875, 32
  %v878 = vpop.permute.xlu0 %877
  %v880 = vadd.f32 %v870, %v878
  %v881 = vtanh.pop %v880
  %883 = vrot.lane.b32.xlu0 %v881, 64
  %v884 = vpop.permute.xlu0 %883
  %v886 = vmul.f32 %v868, %v884
  %888 = vrot.lane.b32.xlu0 %v886, 32
  %v889 = vpop.permute.xlu0 %888
  %892 = vrot.lane.b32.xlu0 %v848, 64
  %v893 = vpop.permute.xlu0 %892
  %v895 = vsel %vm160, %v889, %v893
  %v896 = vpack.c.bf16 %v895, %v895
  %v898 = vsel %vm203, %v896, 0
  %900 = vmatpush.bf16.msra.mxu0 0
  %901 = vmatpush.bf16.msra.mxu0 0
  %902 = vmatpush.bf16.msra.mxu0 0
  %903 = vmatpush.bf16.msra.mxu0 0
  %904 = vmatpush.bf16.msra.mxu0 %v193
  %905 = vmatpush.bf16.msra.mxu0 %v191
  %906 = vmatpush.bf16.msra.mxu0 %v189
  %907 = vmatpush.bf16.msra.mxu0 %v187
  %908 = vmatmul.bf16.gmra.mxu0 %v898
  %v909 = vpop.f32.mrf.mxu0
  %v910 = vadd.f32 0.0, %v909
  %v911 = vpop.f32.mrf.mxu0
  %912 = vdwg.mxu0
  %913 = vmatpush.bf16.msra.mxu0 0
  %914 = vmatpush.bf16.msra.mxu0 0
  %915 = vmatpush.bf16.msra.mxu0 0
  %916 = vmatpush.bf16.msra.mxu0 0
  %917 = vmatpush.bf16.msra.mxu0 %v194
  %918 = vmatpush.bf16.msra.mxu0 %v192
  %919 = vmatpush.bf16.msra.mxu0 %v190
  %920 = vmatpush.bf16.msra.mxu0 %v188
  %921 = vmatmul.bf16.gmra.mxu0 %v898
  %v922 = vpop.f32.mrf.mxu0
  %v923 = vadd.f32 0.0, %v922
  %v924 = vpop.f32.mrf.mxu0
  %925 = vdwg.mxu0
  %v926 = vadd.f32 %v910, %v234
  %v927 = vxor.u32 %v926, 2147483648
  %v928 = vmul.f32 %v927, 1.442695
  %v929 = vpow.pop %v928
  %v930 = vadd.f32 %v929, 1.0
  %v931 = vrcp.pop %v930
  %v932 = vmul.f32 %v930, %v931
  %v933 = vsub.f32 1.0, %v932
  %v934 = vmul.f32 %v931, %v933
  %v935 = vadd.f32 %v931, %v934
  %vm936 = vweird.f32 %v930
  %vm937 = vweird.f32 %v931
  %vm938 = vmor %vm936, %vm937
  %v939 = vsel %vm938, %v931, %v935
  %v940 = vand.u32 2147483647, %v930
  %vm941 = vcmp.eq.f32.partialorder %v940, 8.507059e+37
  %v942 = vand.u32 %v930, 2147483648
  %v943 = vor.u32 1.1754944e-38, %v942
  %v944 = vsel %vm941, %v943, %v939
  %v945 = vmul.f32 1.0, %v944
  %v946 = vtanh.pop %v926
  %v947 = vmul.f32 %v945, %v842
  %949 = vrot.lane.b32.xlu0 %v946, 64
  %v950 = vpop.permute.xlu0 %949
  %v952 = vmul.f32 %v945, %v950
  %954 = vrot.lane.b32.xlu0 %v952, 32
  %v955 = vpop.permute.xlu0 %954
  %v957 = vadd.f32 %v947, %v955
  %v958 = vtanh.pop %v957
  %960 = vrot.lane.b32.xlu0 %v958, 64
  %v961 = vpop.permute.xlu0 %960
  %v963 = vmul.f32 %v945, %v961
  %v964 = vadd.f32 %v116, %v923
  %v965 = vxor.u32 %v964, 2147483648
  %v966 = vmul.f32 %v965, 1.442695
  %v967 = vpow.pop %v966
  %v968 = vadd.f32 %v967, 1.0
  %v969 = vrcp.pop %v968
  %v970 = vmul.f32 %v968, %v969
  %v971 = vsub.f32 1.0, %v970
  %v972 = vmul.f32 %v969, %v971
  %v973 = vadd.f32 %v969, %v972
  %vm974 = vweird.f32 %v968
  %vm975 = vweird.f32 %v969
  %vm976 = vmor %vm974, %vm975
  %v977 = vsel %vm976, %v969, %v973
  %v978 = vand.u32 2147483647, %v968
  %vm979 = vcmp.eq.f32.partialorder %v978, 8.507059e+37
  %v980 = vand.u32 %v968, 2147483648
  %v981 = vor.u32 1.1754944e-38, %v980
  %v982 = vsel %vm979, %v981, %v977
  %v983 = vmul.f32 1.0, %v982
  %v984 = vtanh.pop %v964
  %v985 = vmul.f32 %v983, %v880
  %987 = vrot.lane.b32.xlu0 %v984, 64
  %v988 = vpop.permute.xlu0 %987
  %v990 = vmul.f32 %v983, %v988
  %992 = vrot.lane.b32.xlu0 %v990, 32
  %v993 = vpop.permute.xlu0 %992
  %v995 = vadd.f32 %v985, %v993
  %v996 = vtanh.pop %v995
  %998 = vrot.lane.b32.xlu0 %v996, 64
  %v999 = vpop.permute.xlu0 %998
  %v1001 = vmul.f32 %v983, %v999
  %1003 = vrot.lane.b32.xlu0 %v1001, 32
  %v1004 = vpop.permute.xlu0 %1003
  %1007 = vrot.lane.b32.xlu0 %v963, 64
  %v1008 = vpop.permute.xlu0 %1007
  %v1010 = vsel %vm160, %v1004, %v1008
  %v1011 = vpack.c.bf16 %v1010, %v1010
  %v1013 = vsel %vm203, %v1011, 0
  %1015 = vmatpush.bf16.msra.mxu0 0
  %1016 = vmatpush.bf16.msra.mxu0 0
  %1017 = vmatpush.bf16.msra.mxu0 0
  %1018 = vmatpush.bf16.msra.mxu0 0
  %1019 = vmatpush.bf16.msra.mxu0 %v193
  %1020 = vmatpush.bf16.msra.mxu0 %v191
  %1021 = vmatpush.bf16.msra.mxu0 %v189
  %1022 = vmatpush.bf16.msra.mxu0 %v187
  %1023 = vmatmul.bf16.gmra.mxu0 %v1013
  %v1024 = vpop.f32.mrf.mxu0
  %v1025 = vadd.f32 0.0, %v1024
  %v1026 = vpop.f32.mrf.mxu0
  %1027 = vdwg.mxu0
  %v1028 = vadd.f32 %v1025, %v234
  %v1029 = vxor.u32 %v1028, 2147483648
  %v1030 = vmul.f32 %v1029, 1.442695
  %v1031 = vpow.pop %v1030
  %v1032 = vadd.f32 %v1031, 1.0
  %v1033 = vrcp.pop %v1032
  %v1034 = vmul.f32 %v1032, %v1033
  %v1035 = vsub.f32 1.0, %v1034
  %v1036 = vmul.f32 %v1033, %v1035
  %v1037 = vadd.f32 %v1033, %v1036
  %vm1038 = vweird.f32 %v1032
  %vm1039 = vweird.f32 %v1033
  %vm1040 = vmor %vm1038, %vm1039
  %v1041 = vsel %vm1040, %v1033, %v1037
  %v1042 = vand.u32 2147483647, %v1032
  %vm1043 = vcmp.eq.f32.partialorder %v1042, 8.507059e+37
  %v1044 = vand.u32 %v1032, 2147483648
  %v1045 = vor.u32 1.1754944e-38, %v1044
  %v1046 = vsel %vm1043, %v1045, %v1041
  %v1047 = vmul.f32 1.0, %v1046
  %v1048 = vtanh.pop %v1028
  %v1049 = vmul.f32 %v1047, %v957
  %1051 = vrot.lane.b32.xlu0 %v1048, 64
  %v1052 = vpop.permute.xlu0 %1051
  %v1054 = vmul.f32 %v1047, %v1052
  %1056 = vrot.lane.b32.xlu0 %v1054, 32
  %v1057 = vpop.permute.xlu0 %1056
  %v1059 = vadd.f32 %v1049, %v1057
  %v1060 = vtanh.pop %v1059
  %1062 = vrot.lane.b32.xlu0 %v1060, 64
  %v1063 = vpop.permute.xlu0 %1062
  %v1065 = vmul.f32 %v1047, %v1063
  %v1066 = vpack.c.bf16 %v1065, %v1065
  %v1067 = vld [vmem:[%s5] sm:$0xf]
  %v1068 = vld [vmem:[%s5 + $0x4] sm:$0xf]
  %v1069 = vld [vmem:[%s5 + $0x8] sm:$0xf]
  %v1070 = vld [vmem:[%s5 + $0xc] sm:$0xf]
  %v1071 = vld [vmem:[%s6] sm:$0x1]
  %v1073 = vperm.slane %v1071, 0
  %1076 = vrot.lane.b32.xlu0 %v1066, 32
  %v1077 = vpop.permute.xlu0 %1076
  %v1082 = vunpack.c.l.b16 %v1067
  %v1083 = vunpack.c.l.b16 %v1068
  %v1084 = vunpack.c.l.b16 %v1069
  %v1085 = vunpack.c.l.b16 %v1070
  %v1086 = vpack.c.b16 %v1083, %v1082
  %v1087 = vpack.c.b16 %v1085, %v1084
  %v1091 = vsel %vm160, %v1077, 0
  %1093 = vmatpush.bf16.msra.mxu0 0
  %1094 = vmatpush.bf16.msra.mxu0 0
  %1095 = vmatpush.bf16.msra.mxu0 0
  %1096 = vmatpush.bf16.msra.mxu0 0
  %1097 = vmatpush.bf16.msra.mxu0 0
  %1098 = vmatpush.bf16.msra.mxu0 0
  %1099 = vmatpush.bf16.msra.mxu0 %v1087
  %1100 = vmatpush.bf16.msra.mxu0 %v1086
  %1101 = vmatmul.bf16.gmra.mxu0 %v1091
  %v1102 = vpop.f32.mrf.mxu0
  %v1103 = vadd.f32 %v1073, %v1102
  %v1104 = vpop.f32.mrf.mxu0
  %1105 = vdwg.mxu0
  %1106 = vmax.xlane.f32.xlu0 %v1103
  %v1107 = vpop.xlane.xlu0 %1106
  %v1108 = vsub.f32 %v1103, %v1107
  %v1109 = vmul.f32 %v1108, 1.442695
  %v1110 = vpow.pop %v1109
  %1111 = vadd.xlane.f32.xlu0 %v1110
  %v1112 = vpop.xlane.xlu0 %1111
  %v1113 = vrcp.pop %v1112
  %v1114 = vmul.f32 %v1112, %v1113
  %v1115 = vsub.f32 1.0, %v1114
  %v1116 = vmul.f32 %v1113, %v1115
  %v1117 = vadd.f32 %v1113, %v1116
  %vm1118 = vweird.f32 %v1112
  %vm1119 = vweird.f32 %v1113
  %vm1120 = vmor %vm1118, %vm1119
  %v1121 = vsel %vm1120, %v1113, %v1117
  %v1122 = vand.u32 2147483647, %v1112
  %vm1123 = vcmp.eq.f32.partialorder %v1122, 8.507059e+37
  %v1124 = vand.u32 %v1112, 2147483648
  %v1125 = vor.u32 1.1754944e-38, %v1124
  %v1126 = vsel %vm1123, %v1125, %v1121
  %v1127 = vmul.f32 %v1110, %v1126
  %1128 = vst [vmem:[%s7] sm:$0xff] %v1127
  // Predicated region
  $region30: #{lstm_net_forward.1} parent=0 // pred_check
    _
  $region31: #{lstm_net_forward.1} parent=0 // pred_check_branch
    %1130 = sbr.rel (0) target = $region33
  $region32: #{lstm_net_forward.1} parent=0 // pred_region
    _
  $region33: #{lstm_net_forward.1} parent=0 // pred_fallthru
    _
  // Predicated region
  $region34: #{lstm_net_forward.1} parent=0 // pred_check
    _
  $region35: #{lstm_net_forward.1} parent=0 // pred_check_branch
    %1132 = sbr.rel (0) target = $region37
  $region36: #{lstm_net_forward.1} parent=0 // pred_region
    _
  $region37: #{lstm_net_forward.1} parent=0 // pred_fallthru
    _

</llo_original>
